<compile_context>
chip_gen: v7x
topology: tpu7x:2x2x1
jax: 0.10.0
libtpu: 0.0.40
codegen_flags: <defaults>
</compile_context>

<pallas_src>
import functools

import jax
import jax.numpy as jnp
from jax.experimental import pallas as pl
from jax.experimental.pallas import tpu as pltpu


def _round_up(x, m):
    return ((x + m - 1) // m) * m


# ----------------------------- Pallas kernel ---------------------------------
def fused_gcn_layer_kernel(a_ref, h_ref, w_ref, b_ref, o_ref, acc_ref, *, apply_relu):
    """One (row-tile i, k-tile) step of  out = relu?( A @ (H @ W) + b' ).

    a_ref:   (tm, tk)      bf16   A_hat tile (streamed)
    h_ref:   (tk, f_in)    bf16   node-feature tile (streamed)
    w_ref:   (f_in, f_pad) bf16   folded weight (VMEM resident)
    b_ref:   (1, f_pad)    f32    folded bias   (VMEM resident)
    o_ref:   (tm, f_pad)   bf16/f32 output tile (resident across k)
    acc_ref: (tm, f_pad)   f32    accumulator scratch
    """
    k = pl.program_id(1)

    @pl.when(k == 0)
    def _():
        acc_ref[...] = jnp.zeros_like(acc_ref)

    # Feature transform for this k tile (recomputed per row tile; MXU slack is free
    # because the kernel is HBM-bound on the A stream).
    xw = jnp.dot(h_ref[...], w_ref[...], preferred_element_type=jnp.float32)
    acc_ref[...] += jnp.dot(
        a_ref[...], xw.astype(jnp.bfloat16), preferred_element_type=jnp.float32
    )

    @pl.when(k == pl.num_programs(1) - 1)
    def _():
        y = acc_ref[...] + b_ref[...]
        if apply_relu:
            y = jnp.maximum(y, 0.0)
        o_ref[...] = y.astype(o_ref.dtype)


def gcn_layer(a_bf16, h_bf16, w_bf16, bias_f32, *, apply_relu, out_dtype):
    """out = relu?(A @ (H @ W) + b), tiled rows (parallel) x contraction (arbitrary)."""
    n_pad = a_bf16.shape[0]
    f_in = w_bf16.shape[0]
    f_pad = w_bf16.shape[1]

    tm = min(n_pad, 512)
    tk = 1024 if n_pad % 1024 == 0 else min(n_pad, 512)

    kern = functools.partial(fused_gcn_layer_kernel, apply_relu=apply_relu)
    return pl.pallas_call(
        kern,
        out_shape=jax.ShapeDtypeStruct((n_pad, f_pad), out_dtype),
        grid_spec=pltpu.PrefetchScalarGridSpec(
            num_scalar_prefetch=0,
            grid=(n_pad // tm, n_pad // tk),
            in_specs=[
                pl.BlockSpec((tm, tk), lambda i, k: (i, k)),       # A tile (bf16)
                pl.BlockSpec((tk, f_in), lambda i, k: (k, 0)),     # H tile (bf16)
                pl.BlockSpec((f_in, f_pad), lambda i, k: (0, 0)),  # W resident (bf16)
                pl.BlockSpec((1, f_pad), lambda i, k: (0, 0)),     # bias resident (f32)
            ],
            out_specs=pl.BlockSpec((tm, f_pad), lambda i, k: (i, 0)),
            scratch_shapes=[pltpu.VMEM((tm, f_pad), jnp.float32)],
        ),
        compiler_params=pltpu.CompilerParams(
            dimension_semantics=("parallel", "arbitrary"),
        ),
    )(a_bf16, h_bf16, w_bf16, bias_f32)


# ------------------------------- glue (JAX) ----------------------------------
def build_normalized_adjacency(edge_index, num_nodes):
    """D^{-1/2} (A + I) D^{-1/2} from edge_index [2, E] (GCNConv normalization).

    Duplicate edges sum (scatter-add), matching PyG; self loops added for all nodes.
    """
    src = edge_index[0]
    dst = edge_index[1]
    a = jnp.zeros((num_nodes, num_nodes), jnp.float32)
    a = a.at[dst, src].add(1.0)
    a = a + jnp.eye(num_nodes, dtype=jnp.float32)  # self loops
    deg = jnp.sum(a, axis=1)
    d_inv_sqrt = jnp.where(deg > 0, 1.0 / jnp.sqrt(deg), 0.0)
    return a * d_inv_sqrt[:, None] * d_inv_sqrt[None, :]


def init_params(key, num_features, hidden_channels, num_classes, num_layers):
    """Deterministic Glorot-style init; BN at default stats (gamma=1, beta=0,
    mean=0, var=1).  Real checkpoints must supply actual running stats."""
    dims = [num_features] + [hidden_channels] * (num_layers - 1) + [num_classes]
    params = []
    eps = 1e-5
    for i in range(num_layers):
        key, wk = jax.random.split(key)
        fan_in, fan_out = dims[i], dims[i + 1]
        limit = (6.0 / (fan_in + fan_out)) ** 0.5
        w = jax.random.uniform(wk, (fan_in, fan_out), jnp.float32, -limit, limit)
        b = jnp.zeros((fan_out,), jnp.float32)
        if i < num_layers - 1:
            # eval-mode BN folded to affine: scale = gamma/sqrt(var+eps), shift = beta - mean*scale
            scale = jnp.full((fan_out,), 1.0 / (1.0 + eps) ** 0.5, jnp.float32)
            shift = jnp.zeros((fan_out,), jnp.float32)
        else:
            scale = jnp.ones((fan_out,), jnp.float32)
            shift = jnp.zeros((fan_out,), jnp.float32)
        params.append((w, b, scale, shift))
    return params


def gnnsafe_forward(x, edge_index, params):
    """GNNSafe.forward: run the GCN encoder, return logits [N, num_classes]."""
    n, f_in = x.shape
    num_classes = params[-1][0].shape[1]
    num_layers = len(params)

    # Pad the node axis so A can be tiled (single 512 tile for small graphs; a
    # multiple of 1024 otherwise so row-tile count is even -> clean 2-TC sharding).
    n_pad = 512 if n <= 512 else _round_up(n, 1024)

    a = build_normalized_adjacency(edge_index, n)
    a_pad = (
        jnp.zeros((n_pad, n_pad), jnp.bfloat16).at[:n, :n].set(a.astype(jnp.bfloat16))
    )

    # Padded rows of h are harmless: their adjacency columns are zero.
    f_in_pad = _round_up(f_in, 128)
    h = (
        jnp.zeros((n_pad, f_in_pad), jnp.bfloat16)
        .at[:n, :f_in]
        .set(x.astype(jnp.bfloat16))
    )

    for i, (w, b, scale, shift) in enumerate(params):
        is_last = i == num_layers - 1
        f_in_cur = h.shape[1]
        f_out = w.shape[1]
        f_pad = _round_up(f_out, 128)

        # Fold the eval-mode BN affine into the layer weights / bias.
        w_f = w * scale[None, :]
        b_f = b * scale + shift

        # Lane-dense padded operands (extra rows/cols are zero and stay zero).
        w_pad = (
            jnp.zeros((f_in_cur, f_pad), jnp.bfloat16)
            .at[: w.shape[0], :f_out]
            .set(w_f.astype(jnp.bfloat16))
        )
        b_pad = jnp.zeros((1, f_pad), jnp.float32).at[0, :f_out].set(b_f)

        out_dtype = jnp.float32 if is_last else jnp.bfloat16
        h = gcn_layer(
            a_pad, h, w_pad, b_pad, apply_relu=not is_last, out_dtype=out_dtype
        )
        # dropout is identity in eval mode

    return h[:n, :num_classes]


def reference_forward(x, edge_index, params):
    """Pure-JAX f32 reference of the same eval-mode GCN encoder."""
    n = x.shape[0]
    a = build_normalized_adjacency(edge_index, n)
    h = x.astype(jnp.float32)
    num_layers = len(params)
    for i, (w, b, scale, shift) in enumerate(params):
        is_last = i == num_layers - 1
        h = a @ (h @ w) + b
        if not is_last:
            h = h * scale + shift
            h = jnp.maximum(h, 0.0)
    return h


# --------------------------------- main ---------------------------------------
if __name__ == "__main__":
    # small synthetic graph consistent with the module's expectations
    N = 384             # nodes (pads to 512 -> single-step grid on the fused kernel)
    NUM_FEATURES = 16
    HIDDEN = 32         # args.hidden_channels
    NUM_CLASSES = 4
    NUM_LAYERS = 2      # args.num_layers
    E = 1200            # edges

    key = jax.random.PRNGKey(0)
    kx, ke, kp = jax.random.split(key, 3)

    x = jax.random.normal(kx, (N, NUM_FEATURES), jnp.float32)
    edge_index = jax.random.randint(ke, (2, E), 0, N, jnp.int32)

    params = init_params(kp, NUM_FEATURES, HIDDEN, NUM_CLASSES, NUM_LAYERS)

    logits = gnnsafe_forward(x, edge_index, params)
    jax.block_until_ready(logits)
    assert logits.shape == (N, NUM_CLASSES)

    # Correctness check vs pure-JAX f32 reference (bf16 operands -> loose tolerance).
    ref = reference_forward(x, edge_index, params)
    max_err = float(jnp.max(jnp.abs(logits - ref)))
    assert max_err < 0.2, f"max abs error vs reference too large: {max_err}"

    print("KERNEL_OK")
</pallas_src>

<mosaic_0001>
module attributes {stable_mosaic.version = 11 : i64} {
  func.func @fused_gcn_layer_kernel(%arg0: i32, %arg1: i32, %arg2: memref<512x512xbf16, #tpu.memory_space<vmem>>, %arg3: memref<512x128xbf16, #tpu.memory_space<vmem>>, %arg4: memref<128x128xbf16, #tpu.memory_space<vmem>>, %arg5: memref<1x128xf32, #tpu.memory_space<vmem>>, %arg6: memref<512x128xbf16, #tpu.memory_space<vmem>>, %arg7: memref<512x128xf32, #tpu.memory_space<vmem>>) attributes {dimension_semantics = [#tpu.dimension_semantics<parallel>, #tpu.dimension_semantics<arbitrary>], iteration_bounds = array<i64: 1, 1>, scalar_prefetch = 0 : i64, scratch_operands = 1 : i64, tpu.core_type = #tpu.core_type<tc>, window_params = [{transform_indices = @transform_0, window_bounds = array<i64: 512, 512>}, {transform_indices = @transform_1, window_bounds = array<i64: 512, 128>}, {pipeline_mode = #tpu.pipeline_mode<synchronous>, transform_indices = @transform_2, window_bounds = array<i64: 128, 128>}, {pipeline_mode = #tpu.pipeline_mode<synchronous>, transform_indices = @transform_3, window_bounds = array<i64: 1, 128>}, {transform_indices = @transform_4, window_bounds = array<i64: 512, 128>}]} {
    %c0_i32 = arith.constant 0 : i32
    %0 = arith.cmpi eq, %arg1, %c0_i32 : i32
    %1 = arith.extui %0 : i1 to i32
    %c0_i32_0 = arith.constant 0 : i32
    %2 = arith.cmpi ne, %1, %c0_i32_0 : i32
    scf.if %2 {
      %cst_13 = arith.constant 0.000000e+00 : f32
      %15 = vector.broadcast %cst_13 : f32 to vector<512x128xf32>
      %c0_14 = arith.constant 0 : index
      %c0_15 = arith.constant 0 : index
      %16 = vector.load %arg7[%c0_14, %c0_15] : memref<512x128xf32, #tpu.memory_space<vmem>>, vector<512x128xf32>
      tpu.vector_store %arg7[%c0_14, %c0_15], %15 {strides = array<i32>} : memref<512x128xf32, #tpu.memory_space<vmem>>, vector<512x128xf32>,
    } else {
    }
    %c0 = arith.constant 0 : index
    %c0_1 = arith.constant 0 : index
    %3 = vector.load %arg3[%c0, %c0_1] : memref<512x128xbf16, #tpu.memory_space<vmem>>, vector<512x128xbf16>
    %c0_2 = arith.constant 0 : index
    %c0_3 = arith.constant 0 : index
    %4 = vector.load %arg4[%c0_2, %c0_3] : memref<128x128xbf16, #tpu.memory_space<vmem>>, vector<128x128xbf16>
    %cst = arith.constant dense<0.000000e+00> : vector<512x128xf32>
    %5 = tpu.matmul %3, %4, %cst {dimension_numbers = #tpu.dot_dimension_numbers<[1], [0], [0], [1], [0, 0, 1, 1], [], []>} : vector<512x128xbf16>, vector<128x128xbf16>, vector<512x128xf32> -> vector<512x128xf32>
    %c0_4 = arith.constant 0 : index
    %c0_5 = arith.constant 0 : index
    %6 = vector.load %arg7[%c0_4, %c0_5] : memref<512x128xf32, #tpu.memory_space<vmem>>, vector<512x128xf32>
    %c0_6 = arith.constant 0 : index
    %c0_7 = arith.constant 0 : index
    %7 = vector.load %arg2[%c0_6, %c0_7] : memref<512x512xbf16, #tpu.memory_space<vmem>>, vector<512x512xbf16>
    %8 = arith.truncf %5 : vector<512x128xf32> to vector<512x128xbf16>
    %cst_8 = arith.constant dense<0.000000e+00> : vector<512x128xf32>
    %9 = tpu.matmul %7, %8, %cst_8 {dimension_numbers = #tpu.dot_dimension_numbers<[1], [0], [0], [1], [0, 0, 1, 1], [], []>} : vector<512x512xbf16>, vector<512x128xbf16>, vector<512x128xf32> -> vector<512x128xf32>
    %10 = arith.addf %6, %9 : vector<512x128xf32>
    %c0_9 = arith.constant 0 : index
    %c0_10 = arith.constant 0 : index
    %11 = vector.load %arg7[%c0_9, %c0_10] : memref<512x128xf32, #tpu.memory_space<vmem>>, vector<512x128xf32>
    tpu.vector_store %arg7[%c0_9, %c0_10], %10 {strides = array<i32>} : memref<512x128xf32, #tpu.memory_space<vmem>>, vector<512x128xf32>,
    %c0_i32_11 = arith.constant 0 : i32
    %12 = arith.cmpi eq, %arg1, %c0_i32_11 : i32
    %13 = arith.extui %12 : i1 to i32
    %c0_i32_12 = arith.constant 0 : i32
    %14 = arith.cmpi ne, %13, %c0_i32_12 : i32
    scf.if %14 {
      %c0_13 = arith.constant 0 : index
      %c0_14 = arith.constant 0 : index
      %15 = vector.load %arg7[%c0_13, %c0_14] : memref<512x128xf32, #tpu.memory_space<vmem>>, vector<512x128xf32>
      %c0_15 = arith.constant 0 : index
      %c0_16 = arith.constant 0 : index
      %16 = vector.load %arg5[%c0_15, %c0_16] : memref<1x128xf32, #tpu.memory_space<vmem>>, vector<1x128xf32>
      %17 = vector.broadcast %16 : vector<1x128xf32> to vector<512x128xf32>
      %18 = arith.addf %15, %17 : vector<512x128xf32>
      %cst_17 = arith.constant 0.000000e+00 : f32
      %19 = vector.broadcast %cst_17 : f32 to vector<512x128xf32>
      %20 = arith.maximumf %18, %19 : vector<512x128xf32>
      %21 = arith.truncf %20 : vector<512x128xf32> to vector<512x128xbf16>
      %c0_18 = arith.constant 0 : index
      %c0_19 = arith.constant 0 : index
      %22 = vector.load %arg6[%c0_18, %c0_19] : memref<512x128xbf16, #tpu.memory_space<vmem>>, vector<512x128xbf16>
      tpu.vector_store %arg6[%c0_18, %c0_19], %21 {strides = array<i32>} : memref<512x128xbf16, #tpu.memory_space<vmem>>, vector<512x128xbf16>,
    } else {
    }
    return
  }
  func.func @transform_0(%arg0: i32, %arg1: i32) -> (i32, i32) {
    %c0_i32 = arith.constant 0 : i32
    return %arg0, %arg1 : i32, i32
  }
  func.func @transform_1(%arg0: i32, %arg1: i32) -> (i32, i32) {
    %c0_i32 = arith.constant 0 : i32
    %c0_i32_0 = arith.constant 0 : i32
    return %arg1, %c0_i32 : i32, i32
  }
  func.func @transform_2(%arg0: i32, %arg1: i32) -> (i32, i32) {
    %c0_i32 = arith.constant 0 : i32
    %c0_i32_0 = arith.constant 0 : i32
    %c0_i32_1 = arith.constant 0 : i32
    return %c0_i32, %c0_i32_0 : i32, i32
  }
  func.func @transform_3(%arg0: i32, %arg1: i32) -> (i32, i32) {
    %c0_i32 = arith.constant 0 : i32
    %c0_i32_0 = arith.constant 0 : i32
    %c0_i32_1 = arith.constant 0 : i32
    return %c0_i32, %c0_i32_0 : i32, i32
  }
  func.func @transform_4(%arg0: i32, %arg1: i32) -> (i32, i32) {
    %c0_i32 = arith.constant 0 : i32
    %c0_i32_0 = arith.constant 0 : i32
    return %arg0, %c0_i32 : i32, i32
  }
}

</mosaic_0001>

<llo_original>
// kernel: tpu_custom_call.1
$region0: #{tpu_custom_call.1}
  #allocation0 [shape = 'u32[]', space=smem, size = 0x4, offset = 0x4, fixed_abs, tag = 'smem constant byte address 0x4 - core index']
  #allocation1 [shape = 'u32[144,128]{1,0:T(1,128)}', space=vmem, size = 0x12000, scoped, tag = 'internal scratch']
  #allocation2 [shape = 'f32[512,128]{1,0:T(8,128)}', space=vmem, size = 0x40000, scoped, tag = 'scratch operand']
  %s0 = inlined_call_operand.hbm [shape: bf16[512,512], index: 0, kind: input, shape index: {}]
  %s1 = inlined_call_operand.hbm [shape: bf16[512,128], index: 1, kind: input, shape index: {}]
  %s2 = inlined_call_operand.hbm [shape: bf16[128,128], index: 2, kind: input, shape index: {}]
  %s3 = inlined_call_operand.vmem [shape: f32[1,128], index: 3, kind: input, shape index: {}]
  %s4 = inlined_call_operand.hbm [shape: bf16[512,128], index: 4, kind: output, shape index: {}]
  %s5 = sld [smem:[#allocation0]]
  $region46: #{tpu_custom_call.1} parent=0
    _
  %s7 = ssub.s32 1, %s5
  %s8 = scalar_select 0, %s7, %s5
  $region1: #{tpu_custom_call.1} parent=0
    #allocation3 [shape = 'u8[524288]{0}', space=vmem, size = 0x80000, scoped, tag = 'input window, operand 0, single buffered']
    #allocation4 [shape = 's32[1]{0}', space=sflag, size = 0x4, scoped, tag = 'scoped memory for tpu_custom_call.1']
    #allocation5 [shape = 's32[1]{0}', space=sflag, size = 0x4, scoped, tag = 'scoped memory for tpu_custom_call.1']
    #allocation6 [shape = 'u8[131072]{0}', space=vmem, size = 0x20000, scoped, tag = 'input window, operand 1, single buffered']
    #allocation7 [shape = 's32[1]{0}', space=sflag, size = 0x4, scoped, tag = 'scoped memory for tpu_custom_call.1']
    #allocation8 [shape = 'u8[32768]{0}', space=vmem, size = 0x8000, scoped, tag = 'input window, operand 2, single buffered']
    #allocation9 [shape = 'u8[131072]{0}', space=vmem, size = 0x20000, scoped, tag = 'output window, operand 0, single buffered']
    %9 = vsyncpa [#allocation4], 0
    %10 = vsyncpa [#allocation7], 0
    %11 = vsyncpa [#allocation5], 0
    // Predicated region
    $region2: #{tpu_custom_call.1} parent=1 // pred_check
      _
    $region3: #{tpu_custom_call.1} parent=1 // pred_check_branch
      %13 = sbr.rel (0) target = $region5
    $region4: #{tpu_custom_call.1} parent=1 // pred_region
      %s15 = ssub.s32 16384, 16384
      %16 = vsyncadd [#allocation4], %s15
      %s17 = sshll.u32 [#allocation3], 4
      %s18 = int_to_ptr.vmem [resolvable:$true] %s17
      %23 = dma.hbm_to_vmem [thread:$0]  %s0, 16384, %s18, [#allocation4], 256, 256, 16
    $region5: #{tpu_custom_call.1} parent=1 // pred_fallthru
      _
    // Predicated region
    $region6: #{tpu_custom_call.1} parent=1 // pred_check
      _
    $region7: #{tpu_custom_call.1} parent=1 // pred_check_branch
      %25 = sbr.rel (0) target = $region9
    $region8: #{tpu_custom_call.1} parent=1 // pred_region
      %s27 = ssub.s32 4096, 4096
      %28 = vsyncadd [#allocation7], %s27
      %s29 = sshll.u32 [#allocation6], 4
      %s30 = int_to_ptr.vmem [resolvable:$true] %s29
      %35 = dma.hbm_to_vmem [thread:$0]  %s1, 4096, %s30, [#allocation7], 64, 64, 4
    $region9: #{tpu_custom_call.1} parent=1 // pred_fallthru
      _
    // Predicated region
    $region10: #{tpu_custom_call.1} parent=1 // pred_check
      _
    $region11: #{tpu_custom_call.1} parent=1 // pred_check_branch
      %37 = sbr.rel (0) target = $region13
    $region12: #{tpu_custom_call.1} parent=1 // pred_region
      %s39 = ssub.s32 1024, 1024
      %40 = vsyncadd [#allocation7], %s39
      %s41 = sshll.u32 [#allocation8], 4
      %s42 = int_to_ptr.vmem [resolvable:$true] %s41
      %47 = dma.hbm_to_vmem [thread:$0]  %s2, 1024, %s42, [#allocation7], 64, 64, 4
    $region13: #{tpu_custom_call.1} parent=1 // pred_fallthru
      _
    // Predicated region
    $region14: #{tpu_custom_call.1} parent=1 // pred_check
      _
    $region15: #{tpu_custom_call.1} parent=1 // pred_check_branch
      %49 = sbr.rel (0) target = $region17
    $region16: #{tpu_custom_call.1} parent=1 // pred_region
      _
    $region17: #{tpu_custom_call.1} parent=1 // pred_fallthru
      _
    // Predicated region
    $region18: #{tpu_custom_call.1} parent=1 // pred_check
      _
    $region19: #{tpu_custom_call.1} parent=1 // pred_check_branch
      %51 = sbr.rel (0) target = $region21
    $region20: #{tpu_custom_call.1} parent=1 // pred_region
      %52 = dma.done [#allocation4], 16384
    $region21: #{tpu_custom_call.1} parent=1 // pred_fallthru
      _
    // Predicated region
    $region22: #{tpu_custom_call.1} parent=1 // pred_check
      _
    $region23: #{tpu_custom_call.1} parent=1 // pred_check_branch
      %54 = sbr.rel (0) target = $region25
    $region24: #{tpu_custom_call.1} parent=1 // pred_region
      %55 = dma.done [#allocation7], 4096
    $region25: #{tpu_custom_call.1} parent=1 // pred_fallthru
      _
    // Predicated region
    $region26: #{tpu_custom_call.1} parent=1 // pred_check
      _
    $region27: #{tpu_custom_call.1} parent=1 // pred_check_branch
      %57 = sbr.rel (0) target = $region29
    $region28: #{tpu_custom_call.1} parent=1 // pred_region
      %58 = dma.done [#allocation7], 1024
    $region29: #{tpu_custom_call.1} parent=1 // pred_fallthru
      _
    %p60 = scmp.eq.s32.totalorder 0, 0
    // Predicated region
    $region30: #{tpu_custom_call.1} parent=1 // pred_check
      %p61 = pneg %p60
    $region31: #{tpu_custom_call.1} parent=1 // pred_check_branch
      %63 = sbr.rel (%p61) target = $region33
    $region32: #{tpu_custom_call.1} parent=1 // pred_region
      %64 = vst [vmem:[#allocation2] sm:$0xff] 0.0
      %65 = vst [vmem:[#allocation2 + $0x8] sm:$0xff] 0.0
      %66 = vst [vmem:[#allocation2 + $0x10] sm:$0xff] 0.0
      %67 = vst [vmem:[#allocation2 + $0x18] sm:$0xff] 0.0
      %68 = vst [vmem:[#allocation2 + $0x20] sm:$0xff] 0.0
      %69 = vst [vmem:[#allocation2 + $0x28] sm:$0xff] 0.0
      %70 = vst [vmem:[#allocation2 + $0x30] sm:$0xff] 0.0
      %71 = vst [vmem:[#allocation2 + $0x38] sm:$0xff] 0.0
      %72 = vst [vmem:[#allocation2 + $0x40] sm:$0xff] 0.0
      %73 = vst [vmem:[#allocation2 + $0x48] sm:$0xff] 0.0
      %74 = vst [vmem:[#allocation2 + $0x50] sm:$0xff] 0.0
      %75 = vst [vmem:[#allocation2 + $0x58] sm:$0xff] 0.0
      %76 = vst [vmem:[#allocation2 + $0x60] sm:$0xff] 0.0
      %77 = vst [vmem:[#allocation2 + $0x68] sm:$0xff] 0.0
      %78 = vst [vmem:[#allocation2 + $0x70] sm:$0xff] 0.0
      %79 = vst [vmem:[#allocation2 + $0x78] sm:$0xff] 0.0
      %80 = vst [vmem:[#allocation2 + $0x80] sm:$0xff] 0.0
      %81 = vst [vmem:[#allocation2 + $0x88] sm:$0xff] 0.0
      %82 = vst [vmem:[#allocation2 + $0x90] sm:$0xff] 0.0
      %83 = vst [vmem:[#allocation2 + $0x98] sm:$0xff] 0.0
      %84 = vst [vmem:[#allocation2 + $0xa0] sm:$0xff] 0.0
      %85 = vst [vmem:[#allocation2 + $0xa8] sm:$0xff] 0.0
      %86 = vst [vmem:[#allocation2 + $0xb0] sm:$0xff] 0.0
      %87 = vst [vmem:[#allocation2 + $0xb8] sm:$0xff] 0.0
      %88 = vst [vmem:[#allocation2 + $0xc0] sm:$0xff] 0.0
      %89 = vst [vmem:[#allocation2 + $0xc8] sm:$0xff] 0.0
      %90 = vst [vmem:[#allocation2 + $0xd0] sm:$0xff] 0.0
      %91 = vst [vmem:[#allocation2 + $0xd8] sm:$0xff] 0.0
      %92 = vst [vmem:[#allocation2 + $0xe0] sm:$0xff] 0.0
      %93 = vst [vmem:[#allocation2 + $0xe8] sm:$0xff] 0.0
      %94 = vst [vmem:[#allocation2 + $0xf0] sm:$0xff] 0.0
      %95 = vst [vmem:[#allocation2 + $0xf8] sm:$0xff] 0.0
      %96 = vst [vmem:[#allocation2 + $0x100] sm:$0xff] 0.0
      %97 = vst [vmem:[#allocation2 + $0x108] sm:$0xff] 0.0
      %98 = vst [vmem:[#allocation2 + $0x110] sm:$0xff] 0.0
      %99 = vst [vmem:[#allocation2 + $0x118] sm:$0xff] 0.0
      %100 = vst [vmem:[#allocation2 + $0x120] sm:$0xff] 0.0
      %101 = vst [vmem:[#allocation2 + $0x128] sm:$0xff] 0.0
      %102 = vst [vmem:[#allocation2 + $0x130] sm:$0xff] 0.0
      %103 = vst [vmem:[#allocation2 + $0x138] sm:$0xff] 0.0
      %104 = vst [vmem:[#allocation2 + $0x140] sm:$0xff] 0.0
      %105 = vst [vmem:[#allocation2 + $0x148] sm:$0xff] 0.0
      %106 = vst [vmem:[#allocation2 + $0x150] sm:$0xff] 0.0
      %107 = vst [vmem:[#allocation2 + $0x158] sm:$0xff] 0.0
      %108 = vst [vmem:[#allocation2 + $0x160] sm:$0xff] 0.0
      %109 = vst [vmem:[#allocation2 + $0x168] sm:$0xff] 0.0
      %110 = vst [vmem:[#allocation2 + $0x170] sm:$0xff] 0.0
      %111 = vst [vmem:[#allocation2 + $0x178] sm:$0xff] 0.0
      %112 = vst [vmem:[#allocation2 + $0x180] sm:$0xff] 0.0
      %113 = vst [vmem:[#allocation2 + $0x188] sm:$0xff] 0.0
      %114 = vst [vmem:[#allocation2 + $0x190] sm:$0xff] 0.0
      %115 = vst [vmem:[#allocation2 + $0x198] sm:$0xff] 0.0
      %116 = vst [vmem:[#allocation2 + $0x1a0] sm:$0xff] 0.0
      %117 = vst [vmem:[#allocation2 + $0x1a8] sm:$0xff] 0.0
      %118 = vst [vmem:[#allocation2 + $0x1b0] sm:$0xff] 0.0
      %119 = vst [vmem:[#allocation2 + $0x1b8] sm:$0xff] 0.0
      %120 = vst [vmem:[#allocation2 + $0x1c0] sm:$0xff] 0.0
      %121 = vst [vmem:[#allocation2 + $0x1c8] sm:$0xff] 0.0
      %122 = vst [vmem:[#allocation2 + $0x1d0] sm:$0xff] 0.0
      %123 = vst [vmem:[#allocation2 + $0x1d8] sm:$0xff] 0.0
      %124 = vst [vmem:[#allocation2 + $0x1e0] sm:$0xff] 0.0
      %125 = vst [vmem:[#allocation2 + $0x1e8] sm:$0xff] 0.0
      %126 = vst [vmem:[#allocation2 + $0x1f0] sm:$0xff] 0.0
      %127 = vst [vmem:[#allocation2 + $0x1f8] sm:$0xff] 0.0
    $region33: #{tpu_custom_call.1} parent=1 // pred_fallthru
      _
    %v128 = vld [vmem:[#allocation6] sm:$0xf]
    %v129 = vld [vmem:[#allocation6 + $0x4] sm:$0xf]
    %v130 = vld [vmem:[#allocation6 + $0x8] sm:$0xf]
    %v131 = vld [vmem:[#allocation6 + $0xc] sm:$0xf]
    %v132 = vld [vmem:[#allocation6 + $0x10] sm:$0xf]
    %v133 = vld [vmem:[#allocation6 + $0x14] sm:$0xf]
    %v134 = vld [vmem:[#allocation6 + $0x18] sm:$0xf]
    %v135 = vld [vmem:[#allocation6 + $0x1c] sm:$0xf]
    %v136 = vld [vmem:[#allocation6 + $0x20] sm:$0xf]
    %v137 = vld [vmem:[#allocation6 + $0x24] sm:$0xf]
    %v138 = vld [vmem:[#allocation6 + $0x28] sm:$0xf]
    %v139 = vld [vmem:[#allocation6 + $0x2c] sm:$0xf]
    %v140 = vld [vmem:[#allocation6 + $0x30] sm:$0xf]
    %v141 = vld [vmem:[#allocation6 + $0x34] sm:$0xf]
    %v142 = vld [vmem:[#allocation6 + $0x38] sm:$0xf]
    %v143 = vld [vmem:[#allocation6 + $0x3c] sm:$0xf]
    %v144 = vld [vmem:[#allocation6 + $0x40] sm:$0xf]
    %v145 = vld [vmem:[#allocation6 + $0x44] sm:$0xf]
    %v146 = vld [vmem:[#allocation6 + $0x48] sm:$0xf]
    %v147 = vld [vmem:[#allocation6 + $0x4c] sm:$0xf]
    %v148 = vld [vmem:[#allocation6 + $0x50] sm:$0xf]
    %v149 = vld [vmem:[#allocation6 + $0x54] sm:$0xf]
    %v150 = vld [vmem:[#allocation6 + $0x58] sm:$0xf]
    %v151 = vld [vmem:[#allocation6 + $0x5c] sm:$0xf]
    %v152 = vld [vmem:[#allocation6 + $0x60] sm:$0xf]
    %v153 = vld [vmem:[#allocation6 + $0x64] sm:$0xf]
    %v154 = vld [vmem:[#allocation6 + $0x68] sm:$0xf]
    %v155 = vld [vmem:[#allocation6 + $0x6c] sm:$0xf]
    %v156 = vld [vmem:[#allocation6 + $0x70] sm:$0xf]
    %v157 = vld [vmem:[#allocation6 + $0x74] sm:$0xf]
    %v158 = vld [vmem:[#allocation6 + $0x78] sm:$0xf]
    %v159 = vld [vmem:[#allocation6 + $0x7c] sm:$0xf]
    %v160 = vld [vmem:[#allocation6 + $0x80] sm:$0xf]
    %v161 = vld [vmem:[#allocation6 + $0x84] sm:$0xf]
    %v162 = vld [vmem:[#allocation6 + $0x88] sm:$0xf]
    %v163 = vld [vmem:[#allocation6 + $0x8c] sm:$0xf]
    %v164 = vld [vmem:[#allocation6 + $0x90] sm:$0xf]
    %v165 = vld [vmem:[#allocation6 + $0x94] sm:$0xf]
    %v166 = vld [vmem:[#allocation6 + $0x98] sm:$0xf]
    %v167 = vld [vmem:[#allocation6 + $0x9c] sm:$0xf]
    %v168 = vld [vmem:[#allocation6 + $0xa0] sm:$0xf]
    %v169 = vld [vmem:[#allocation6 + $0xa4] sm:$0xf]
    %v170 = vld [vmem:[#allocation6 + $0xa8] sm:$0xf]
    %v171 = vld [vmem:[#allocation6 + $0xac] sm:$0xf]
    %v172 = vld [vmem:[#allocation6 + $0xb0] sm:$0xf]
    %v173 = vld [vmem:[#allocation6 + $0xb4] sm:$0xf]
    %v174 = vld [vmem:[#allocation6 + $0xb8] sm:$0xf]
    %v175 = vld [vmem:[#allocation6 + $0xbc] sm:$0xf]
    %v176 = vld [vmem:[#allocation6 + $0xc0] sm:$0xf]
    %v177 = vld [vmem:[#allocation6 + $0xc4] sm:$0xf]
    %v178 = vld [vmem:[#allocation6 + $0xc8] sm:$0xf]
    %v179 = vld [vmem:[#allocation6 + $0xcc] sm:$0xf]
    %v180 = vld [vmem:[#allocation6 + $0xd0] sm:$0xf]
    %v181 = vld [vmem:[#allocation6 + $0xd4] sm:$0xf]
    %v182 = vld [vmem:[#allocation6 + $0xd8] sm:$0xf]
    %v183 = vld [vmem:[#allocation6 + $0xdc] sm:$0xf]
    %v184 = vld [vmem:[#allocation6 + $0xe0] sm:$0xf]
    %v185 = vld [vmem:[#allocation6 + $0xe4] sm:$0xf]
    %v186 = vld [vmem:[#allocation6 + $0xe8] sm:$0xf]
    %v187 = vld [vmem:[#allocation6 + $0xec] sm:$0xf]
    %v188 = vld [vmem:[#allocation6 + $0xf0] sm:$0xf]
    %v189 = vld [vmem:[#allocation6 + $0xf4] sm:$0xf]
    %v190 = vld [vmem:[#allocation6 + $0xf8] sm:$0xf]
    %v191 = vld [vmem:[#allocation6 + $0xfc] sm:$0xf]
    %v192 = vld [vmem:[#allocation8] sm:$0xf]
    %v193 = vld [vmem:[#allocation8 + $0x4] sm:$0xf]
    %v194 = vld [vmem:[#allocation8 + $0x8] sm:$0xf]
    %v195 = vld [vmem:[#allocation8 + $0xc] sm:$0xf]
    %v196 = vld [vmem:[#allocation8 + $0x10] sm:$0xf]
    %v197 = vld [vmem:[#allocation8 + $0x14] sm:$0xf]
    %v198 = vld [vmem:[#allocation8 + $0x18] sm:$0xf]
    %v199 = vld [vmem:[#allocation8 + $0x1c] sm:$0xf]
    %v200 = vld [vmem:[#allocation8 + $0x20] sm:$0xf]
    %v201 = vld [vmem:[#allocation8 + $0x24] sm:$0xf]
    %v202 = vld [vmem:[#allocation8 + $0x28] sm:$0xf]
    %v203 = vld [vmem:[#allocation8 + $0x2c] sm:$0xf]
    %v204 = vld [vmem:[#allocation8 + $0x30] sm:$0xf]
    %v205 = vld [vmem:[#allocation8 + $0x34] sm:$0xf]
    %v206 = vld [vmem:[#allocation8 + $0x38] sm:$0xf]
    %v207 = vld [vmem:[#allocation8 + $0x3c] sm:$0xf]
    %v272 = vunpack.c.l.b16 %v128
    %v273 = vunpack.c.l.b16 %v129
    %v274 = vunpack.c.l.b16 %v130
    %v275 = vunpack.c.l.b16 %v131
    %v276 = vunpack.c.l.b16 %v132
    %v277 = vunpack.c.l.b16 %v133
    %v278 = vunpack.c.l.b16 %v134
    %v279 = vunpack.c.l.b16 %v135
    %v280 = vunpack.c.l.b16 %v136
    %v281 = vunpack.c.l.b16 %v137
    %v282 = vunpack.c.l.b16 %v138
    %v283 = vunpack.c.l.b16 %v139
    %v284 = vunpack.c.l.b16 %v140
    %v285 = vunpack.c.l.b16 %v141
    %v286 = vunpack.c.l.b16 %v142
    %v287 = vunpack.c.l.b16 %v143
    %v288 = vunpack.c.l.b16 %v144
    %v289 = vunpack.c.l.b16 %v145
    %v290 = vunpack.c.l.b16 %v146
    %v291 = vunpack.c.l.b16 %v147
    %v292 = vunpack.c.l.b16 %v148
    %v293 = vunpack.c.l.b16 %v149
    %v294 = vunpack.c.l.b16 %v150
    %v295 = vunpack.c.l.b16 %v151
    %v296 = vunpack.c.l.b16 %v152
    %v297 = vunpack.c.l.b16 %v153
    %v298 = vunpack.c.l.b16 %v154
    %v299 = vunpack.c.l.b16 %v155
    %v300 = vunpack.c.l.b16 %v156
    %v301 = vunpack.c.l.b16 %v157
    %v302 = vunpack.c.l.b16 %v158
    %v303 = vunpack.c.l.b16 %v159
    %v304 = vunpack.c.l.b16 %v160
    %v305 = vunpack.c.l.b16 %v161
    %v306 = vunpack.c.l.b16 %v162
    %v307 = vunpack.c.l.b16 %v163
    %v308 = vunpack.c.l.b16 %v164
    %v309 = vunpack.c.l.b16 %v165
    %v310 = vunpack.c.l.b16 %v166
    %v311 = vunpack.c.l.b16 %v167
    %v312 = vunpack.c.l.b16 %v168
    %v313 = vunpack.c.l.b16 %v169
    %v314 = vunpack.c.l.b16 %v170
    %v315 = vunpack.c.l.b16 %v171
    %v316 = vunpack.c.l.b16 %v172
    %v317 = vunpack.c.l.b16 %v173
    %v318 = vunpack.c.l.b16 %v174
    %v319 = vunpack.c.l.b16 %v175
    %v320 = vunpack.c.l.b16 %v176
    %v321 = vunpack.c.l.b16 %v177
    %v322 = vunpack.c.l.b16 %v178
    %v323 = vunpack.c.l.b16 %v179
    %v324 = vunpack.c.l.b16 %v180
    %v325 = vunpack.c.l.b16 %v181
    %v326 = vunpack.c.l.b16 %v182
    %v327 = vunpack.c.l.b16 %v183
    %v328 = vunpack.c.l.b16 %v184
    %v329 = vunpack.c.l.b16 %v185
    %v330 = vunpack.c.l.b16 %v186
    %v331 = vunpack.c.l.b16 %v187
    %v332 = vunpack.c.l.b16 %v188
    %v333 = vunpack.c.l.b16 %v189
    %v334 = vunpack.c.l.b16 %v190
    %v335 = vunpack.c.l.b16 %v191
    %v336 = vpack.c.b16 %v273, %v272
    %v337 = vpack.c.b16 %v275, %v274
    %v338 = vpack.c.b16 %v277, %v276
    %v339 = vpack.c.b16 %v279, %v278
    %v340 = vpack.c.b16 %v281, %v280
    %v341 = vpack.c.b16 %v283, %v282
    %v342 = vpack.c.b16 %v285, %v284
    %v343 = vpack.c.b16 %v287, %v286
    %v344 = vpack.c.b16 %v289, %v288
    %v345 = vpack.c.b16 %v291, %v290
    %v346 = vpack.c.b16 %v293, %v292
    %v347 = vpack.c.b16 %v295, %v294
    %v348 = vpack.c.b16 %v297, %v296
    %v349 = vpack.c.b16 %v299, %v298
    %v350 = vpack.c.b16 %v301, %v300
    %v351 = vpack.c.b16 %v303, %v302
    %v352 = vpack.c.b16 %v305, %v304
    %v353 = vpack.c.b16 %v307, %v306
    %v354 = vpack.c.b16 %v309, %v308
    %v355 = vpack.c.b16 %v311, %v310
    %v356 = vpack.c.b16 %v313, %v312
    %v357 = vpack.c.b16 %v315, %v314
    %v358 = vpack.c.b16 %v317, %v316
    %v359 = vpack.c.b16 %v319, %v318
    %v360 = vpack.c.b16 %v321, %v320
    %v361 = vpack.c.b16 %v323, %v322
    %v362 = vpack.c.b16 %v325, %v324
    %v363 = vpack.c.b16 %v327, %v326
    %v364 = vpack.c.b16 %v329, %v328
    %v365 = vpack.c.b16 %v331, %v330
    %v366 = vpack.c.b16 %v333, %v332
    %v367 = vpack.c.b16 %v335, %v334
    %v416 = vunpack.c.l.b16 %v192
    %v417 = vunpack.c.l.b16 %v193
    %v418 = vunpack.c.l.b16 %v194
    %v419 = vunpack.c.l.b16 %v195
    %v420 = vunpack.c.l.b16 %v196
    %v421 = vunpack.c.l.b16 %v197
    %v422 = vunpack.c.l.b16 %v198
    %v423 = vunpack.c.l.b16 %v199
    %v424 = vunpack.c.l.b16 %v200
    %v425 = vunpack.c.l.b16 %v201
    %v426 = vunpack.c.l.b16 %v202
    %v427 = vunpack.c.l.b16 %v203
    %v428 = vunpack.c.l.b16 %v204
    %v429 = vunpack.c.l.b16 %v205
    %v430 = vunpack.c.l.b16 %v206
    %v431 = vunpack.c.l.b16 %v207
    %v432 = vpack.c.b16 %v417, %v416
    %v433 = vpack.c.b16 %v419, %v418
    %v434 = vpack.c.b16 %v421, %v420
    %v435 = vpack.c.b16 %v423, %v422
    %v436 = vpack.c.b16 %v425, %v424
    %v437 = vpack.c.b16 %v427, %v426
    %v438 = vpack.c.b16 %v429, %v428
    %v439 = vpack.c.b16 %v431, %v430
    %448 = vmatprep.subr.bf16.mxu0 0
    %449 = vmatpush1.bf16.msra.mxu0 %v432
    %450 = vmatprep.subr.bf16.mxu0 0
    %451 = vmatpush1.bf16.msra.mxu0 %v433
    %452 = vmatprep.subr.bf16.mxu0 0
    %453 = vmatpush1.bf16.msra.mxu0 %v434
    %454 = vmatprep.subr.bf16.mxu0 0
    %455 = vmatpush1.bf16.msra.mxu0 %v435
    %456 = vmatprep.subr.bf16.mxu0 0
    %457 = vmatpush1.bf16.msra.mxu0 %v436
    %458 = vmatprep.subr.bf16.mxu0 0
    %459 = vmatpush1.bf16.msra.mxu0 %v437
    %460 = vmatprep.subr.bf16.mxu0 0
    %461 = vmatpush1.bf16.msra.mxu0 %v438
    %462 = vmatprep.subr.bf16.mxu0 0
    %463 = vmatpush1.bf16.msra.mxu0 %v439
    %464 = vmatprep.subr.bf16.mxu0 0
    %465 = vmatpush1.bf16.msra.mxu0 0
    %466 = vmatprep.subr.bf16.mxu0 0
    %467 = vmatpush1.bf16.msra.mxu0 0
    %468 = vmatprep.subr.bf16.mxu0 0
    %469 = vmatpush1.bf16.msra.mxu0 0
    %470 = vmatprep.subr.bf16.mxu0 0
    %471 = vmatpush1.bf16.msra.mxu0 0
    %472 = vmatprep.subr.bf16.mxu0 0
    %473 = vmatpush1.bf16.msra.mxu0 0
    %474 = vmatprep.subr.bf16.mxu0 0
    %475 = vmatpush1.bf16.msra.mxu0 0
    %476 = vmatprep.subr.bf16.mxu0 0
    %477 = vmatpush1.bf16.msra.mxu0 0
    %478 = vmatprep.subr.bf16.mxu0 0
    %479 = vmatpush1.bf16.msra.mxu0 0
    %480 = vmatprep.mubr.bf16.mxu0 0
    %481 = vmatmul.mubr.bf16.gmra.mrb[0].mxu0 %v336
    %v482 = vpop.f32.mrb[0].mxu0
    %v483 = vadd.f32 0.0, %v482
    %v484 = vpop.f32.mrb[0].mxu0
    %v485 = vpop.f32.mrb[0].mxu0
    %v486 = vadd.f32 0.0, %v485
    %v487 = vpop.f32.mrb[0].mxu0
    %488 = vmatprep.mubr.bf16.mxu0 0
    %489 = vmatmul.mubr.bf16.gmra.mrb[0].mxu0 %v337
    %v490 = vpop.f32.mrb[0].mxu0
    %v491 = vadd.f32 0.0, %v490
    %v492 = vpop.f32.mrb[0].mxu0
    %v493 = vpop.f32.mrb[0].mxu0
    %v494 = vadd.f32 0.0, %v493
    %v495 = vpop.f32.mrb[0].mxu0
    %496 = vmatprep.mubr.bf16.mxu0 0
    %497 = vmatmul.mubr.bf16.gmra.mrb[0].mxu0 %v338
    %v498 = vpop.f32.mrb[0].mxu0
    %v499 = vadd.f32 0.0, %v498
    %v500 = vpop.f32.mrb[0].mxu0
    %v501 = vpop.f32.mrb[0].mxu0
    %v502 = vadd.f32 0.0, %v501
    %v503 = vpop.f32.mrb[0].mxu0
    %504 = vmatprep.mubr.bf16.mxu0 0
    %505 = vmatmul.mubr.bf16.gmra.mrb[0].mxu0 %v339
    %v506 = vpop.f32.mrb[0].mxu0
    %v507 = vadd.f32 0.0, %v506
    %v508 = vpop.f32.mrb[0].mxu0
    %v509 = vpop.f32.mrb[0].mxu0
    %v510 = vadd.f32 0.0, %v509
    %v511 = vpop.f32.mrb[0].mxu0
    %512 = vmatprep.mubr.bf16.mxu0 0
    %513 = vmatmul.mubr.bf16.gmra.mrb[0].mxu0 %v340
    %v514 = vpop.f32.mrb[0].mxu0
    %v515 = vadd.f32 0.0, %v514
    %v516 = vpop.f32.mrb[0].mxu0
    %v517 = vpop.f32.mrb[0].mxu0
    %v518 = vadd.f32 0.0, %v517
    %v519 = vpop.f32.mrb[0].mxu0
    %520 = vmatprep.mubr.bf16.mxu0 0
    %521 = vmatmul.mubr.bf16.gmra.mrb[0].mxu0 %v341
    %v522 = vpop.f32.mrb[0].mxu0
    %v523 = vadd.f32 0.0, %v522
    %v524 = vpop.f32.mrb[0].mxu0
    %v525 = vpop.f32.mrb[0].mxu0
    %v526 = vadd.f32 0.0, %v525
    %v527 = vpop.f32.mrb[0].mxu0
    %528 = vmatprep.mubr.bf16.mxu0 0
    %529 = vmatmul.mubr.bf16.gmra.mrb[0].mxu0 %v342
    %v530 = vpop.f32.mrb[0].mxu0
    %v531 = vadd.f32 0.0, %v530
    %v532 = vpop.f32.mrb[0].mxu0
    %v533 = vpop.f32.mrb[0].mxu0
    %v534 = vadd.f32 0.0, %v533
    %v535 = vpop.f32.mrb[0].mxu0
    %536 = vmatprep.mubr.bf16.mxu0 0
    %537 = vmatmul.mubr.bf16.gmra.mrb[0].mxu0 %v343
    %v538 = vpop.f32.mrb[0].mxu0
    %v539 = vadd.f32 0.0, %v538
    %v540 = vpop.f32.mrb[0].mxu0
    %v541 = vpop.f32.mrb[0].mxu0
    %v542 = vadd.f32 0.0, %v541
    %v543 = vpop.f32.mrb[0].mxu0
    %544 = vmatprep.mubr.bf16.mxu0 0
    %545 = vmatmul.mubr.bf16.gmra.mrb[0].mxu0 %v344
    %v546 = vpop.f32.mrb[0].mxu0
    %v547 = vadd.f32 0.0, %v546
    %v548 = vpop.f32.mrb[0].mxu0
    %v549 = vpop.f32.mrb[0].mxu0
    %v550 = vadd.f32 0.0, %v549
    %v551 = vpop.f32.mrb[0].mxu0
    %552 = vmatprep.mubr.bf16.mxu0 0
    %553 = vmatmul.mubr.bf16.gmra.mrb[0].mxu0 %v345
    %v554 = vpop.f32.mrb[0].mxu0
    %v555 = vadd.f32 0.0, %v554
    %v556 = vpop.f32.mrb[0].mxu0
    %v557 = vpop.f32.mrb[0].mxu0
    %v558 = vadd.f32 0.0, %v557
    %v559 = vpop.f32.mrb[0].mxu0
    %560 = vmatprep.mubr.bf16.mxu0 0
    %561 = vmatmul.mubr.bf16.gmra.mrb[0].mxu0 %v346
    %v562 = vpop.f32.mrb[0].mxu0
    %v563 = vadd.f32 0.0, %v562
    %v564 = vpop.f32.mrb[0].mxu0
    %v565 = vpop.f32.mrb[0].mxu0
    %v566 = vadd.f32 0.0, %v565
    %v567 = vpop.f32.mrb[0].mxu0
    %568 = vmatprep.mubr.bf16.mxu0 0
    %569 = vmatmul.mubr.bf16.gmra.mrb[0].mxu0 %v347
    %v570 = vpop.f32.mrb[0].mxu0
    %v571 = vadd.f32 0.0, %v570
    %v572 = vpop.f32.mrb[0].mxu0
    %v573 = vpop.f32.mrb[0].mxu0
    %v574 = vadd.f32 0.0, %v573
    %v575 = vpop.f32.mrb[0].mxu0
    %576 = vmatprep.mubr.bf16.mxu0 0
    %577 = vmatmul.mubr.bf16.gmra.mrb[0].mxu0 %v348
    %v578 = vpop.f32.mrb[0].mxu0
    %v579 = vadd.f32 0.0, %v578
    %v580 = vpop.f32.mrb[0].mxu0
    %v581 = vpop.f32.mrb[0].mxu0
    %v582 = vadd.f32 0.0, %v581
    %v583 = vpop.f32.mrb[0].mxu0
    %584 = vmatprep.mubr.bf16.mxu0 0
    %585 = vmatmul.mubr.bf16.gmra.mrb[0].mxu0 %v349
    %v586 = vpop.f32.mrb[0].mxu0
    %v587 = vadd.f32 0.0, %v586
    %v588 = vpop.f32.mrb[0].mxu0
    %v589 = vpop.f32.mrb[0].mxu0
    %v590 = vadd.f32 0.0, %v589
    %v591 = vpop.f32.mrb[0].mxu0
    %592 = vmatprep.mubr.bf16.mxu0 0
    %593 = vmatmul.mubr.bf16.gmra.mrb[0].mxu0 %v350
    %v594 = vpop.f32.mrb[0].mxu0
    %v595 = vadd.f32 0.0, %v594
    %v596 = vpop.f32.mrb[0].mxu0
    %v597 = vpop.f32.mrb[0].mxu0
    %v598 = vadd.f32 0.0, %v597
    %v599 = vpop.f32.mrb[0].mxu0
    %600 = vmatprep.mubr.bf16.mxu0 0
    %601 = vmatmul.mubr.bf16.gmra.mrb[0].mxu0 %v351
    %v602 = vpop.f32.mrb[0].mxu0
    %v603 = vadd.f32 0.0, %v602
    %v604 = vpop.f32.mrb[0].mxu0
    %v605 = vpop.f32.mrb[0].mxu0
    %v606 = vadd.f32 0.0, %v605
    %v607 = vpop.f32.mrb[0].mxu0
    %608 = vmatprep.mubr.bf16.mxu0 0
    %609 = vmatmul.mubr.bf16.gmra.mrb[0].mxu0 %v352
    %v610 = vpop.f32.mrb[0].mxu0
    %v611 = vadd.f32 0.0, %v610
    %v612 = vpop.f32.mrb[0].mxu0
    %v613 = vpop.f32.mrb[0].mxu0
    %v614 = vadd.f32 0.0, %v613
    %v615 = vpop.f32.mrb[0].mxu0
    %616 = vmatprep.mubr.bf16.mxu0 0
    %617 = vmatmul.mubr.bf16.gmra.mrb[0].mxu0 %v353
    %v618 = vpop.f32.mrb[0].mxu0
    %v619 = vadd.f32 0.0, %v618
    %v620 = vpop.f32.mrb[0].mxu0
    %v621 = vpop.f32.mrb[0].mxu0
    %v622 = vadd.f32 0.0, %v621
    %v623 = vpop.f32.mrb[0].mxu0
    %624 = vmatprep.mubr.bf16.mxu0 0
    %625 = vmatmul.mubr.bf16.gmra.mrb[0].mxu0 %v354
    %v626 = vpop.f32.mrb[0].mxu0
    %v627 = vadd.f32 0.0, %v626
    %v628 = vpop.f32.mrb[0].mxu0
    %v629 = vpop.f32.mrb[0].mxu0
    %v630 = vadd.f32 0.0, %v629
    %v631 = vpop.f32.mrb[0].mxu0
    %632 = vmatprep.mubr.bf16.mxu0 0
    %633 = vmatmul.mubr.bf16.gmra.mrb[0].mxu0 %v355
    %v634 = vpop.f32.mrb[0].mxu0
    %v635 = vadd.f32 0.0, %v634
    %v636 = vpop.f32.mrb[0].mxu0
    %v637 = vpop.f32.mrb[0].mxu0
    %v638 = vadd.f32 0.0, %v637
    %v639 = vpop.f32.mrb[0].mxu0
    %640 = vmatprep.mubr.bf16.mxu0 0
    %641 = vmatmul.mubr.bf16.gmra.mrb[0].mxu0 %v356
    %v642 = vpop.f32.mrb[0].mxu0
    %v643 = vadd.f32 0.0, %v642
    %v644 = vpop.f32.mrb[0].mxu0
    %v645 = vpop.f32.mrb[0].mxu0
    %v646 = vadd.f32 0.0, %v645
    %v647 = vpop.f32.mrb[0].mxu0
    %648 = vmatprep.mubr.bf16.mxu0 0
    %649 = vmatmul.mubr.bf16.gmra.mrb[0].mxu0 %v357
    %v650 = vpop.f32.mrb[0].mxu0
    %v651 = vadd.f32 0.0, %v650
    %v652 = vpop.f32.mrb[0].mxu0
    %v653 = vpop.f32.mrb[0].mxu0
    %v654 = vadd.f32 0.0, %v653
    %v655 = vpop.f32.mrb[0].mxu0
    %656 = vmatprep.mubr.bf16.mxu0 0
    %657 = vmatmul.mubr.bf16.gmra.mrb[0].mxu0 %v358
    %v658 = vpop.f32.mrb[0].mxu0
    %v659 = vadd.f32 0.0, %v658
    %v660 = vpop.f32.mrb[0].mxu0
    %v661 = vpop.f32.mrb[0].mxu0
    %v662 = vadd.f32 0.0, %v661
    %v663 = vpop.f32.mrb[0].mxu0
    %664 = vmatprep.mubr.bf16.mxu0 0
    %665 = vmatmul.mubr.bf16.gmra.mrb[0].mxu0 %v359
    %v666 = vpop.f32.mrb[0].mxu0
    %v667 = vadd.f32 0.0, %v666
    %v668 = vpop.f32.mrb[0].mxu0
    %v669 = vpop.f32.mrb[0].mxu0
    %v670 = vadd.f32 0.0, %v669
    %v671 = vpop.f32.mrb[0].mxu0
    %672 = vmatprep.mubr.bf16.mxu0 0
    %673 = vmatmul.mubr.bf16.gmra.mrb[0].mxu0 %v360
    %v674 = vpop.f32.mrb[0].mxu0
    %v675 = vadd.f32 0.0, %v674
    %v676 = vpop.f32.mrb[0].mxu0
    %v677 = vpop.f32.mrb[0].mxu0
    %v678 = vadd.f32 0.0, %v677
    %v679 = vpop.f32.mrb[0].mxu0
    %680 = vmatprep.mubr.bf16.mxu0 0
    %681 = vmatmul.mubr.bf16.gmra.mrb[0].mxu0 %v361
    %v682 = vpop.f32.mrb[0].mxu0
    %v683 = vadd.f32 0.0, %v682
    %v684 = vpop.f32.mrb[0].mxu0
    %v685 = vpop.f32.mrb[0].mxu0
    %v686 = vadd.f32 0.0, %v685
    %v687 = vpop.f32.mrb[0].mxu0
    %688 = vmatprep.mubr.bf16.mxu0 0
    %689 = vmatmul.mubr.bf16.gmra.mrb[0].mxu0 %v362
    %v690 = vpop.f32.mrb[0].mxu0
    %v691 = vadd.f32 0.0, %v690
    %v692 = vpop.f32.mrb[0].mxu0
    %v693 = vpop.f32.mrb[0].mxu0
    %v694 = vadd.f32 0.0, %v693
    %v695 = vpop.f32.mrb[0].mxu0
    %696 = vmatprep.mubr.bf16.mxu0 0
    %697 = vmatmul.mubr.bf16.gmra.mrb[0].mxu0 %v363
    %v698 = vpop.f32.mrb[0].mxu0
    %v699 = vadd.f32 0.0, %v698
    %v700 = vpop.f32.mrb[0].mxu0
    %v701 = vpop.f32.mrb[0].mxu0
    %v702 = vadd.f32 0.0, %v701
    %v703 = vpop.f32.mrb[0].mxu0
    %704 = vmatprep.mubr.bf16.mxu0 0
    %705 = vmatmul.mubr.bf16.gmra.mrb[0].mxu0 %v364
    %v706 = vpop.f32.mrb[0].mxu0
    %v707 = vadd.f32 0.0, %v706
    %v708 = vpop.f32.mrb[0].mxu0
    %v709 = vpop.f32.mrb[0].mxu0
    %v710 = vadd.f32 0.0, %v709
    %v711 = vpop.f32.mrb[0].mxu0
    %712 = vmatprep.mubr.bf16.mxu0 0
    %713 = vmatmul.mubr.bf16.gmra.mrb[0].mxu0 %v365
    %v714 = vpop.f32.mrb[0].mxu0
    %v715 = vadd.f32 0.0, %v714
    %v716 = vpop.f32.mrb[0].mxu0
    %v717 = vpop.f32.mrb[0].mxu0
    %v718 = vadd.f32 0.0, %v717
    %v719 = vpop.f32.mrb[0].mxu0
    %720 = vmatprep.mubr.bf16.mxu0 0
    %721 = vmatmul.mubr.bf16.gmra.mrb[0].mxu0 %v366
    %v722 = vpop.f32.mrb[0].mxu0
    %v723 = vadd.f32 0.0, %v722
    %v724 = vpop.f32.mrb[0].mxu0
    %v725 = vpop.f32.mrb[0].mxu0
    %v726 = vadd.f32 0.0, %v725
    %v727 = vpop.f32.mrb[0].mxu0
    %728 = vmatprep.mubr.bf16.mxu0 0
    %729 = vmatmul.mubr.bf16.gmra.mrb[0].mxu0 %v367
    %v730 = vpop.f32.mrb[0].mxu0
    %v731 = vadd.f32 0.0, %v730
    %v732 = vpop.f32.mrb[0].mxu0
    %v733 = vpop.f32.mrb[0].mxu0
    %v734 = vadd.f32 0.0, %v733
    %v735 = vpop.f32.mrb[0].mxu0
    %736 = vdwg.mxu0
    %v737 = vld [vmem:[#allocation2] sm:$0xff]
    %v738 = vld [vmem:[#allocation2 + $0x8] sm:$0xff]
    %v739 = vld [vmem:[#allocation2 + $0x10] sm:$0xff]
    %v740 = vld [vmem:[#allocation2 + $0x18] sm:$0xff]
    %v741 = vld [vmem:[#allocation2 + $0x20] sm:$0xff]
    %v742 = vld [vmem:[#allocation2 + $0x28] sm:$0xff]
    %v743 = vld [vmem:[#allocation2 + $0x30] sm:$0xff]
    %v744 = vld [vmem:[#allocation2 + $0x38] sm:$0xff]
    %v745 = vld [vmem:[#allocation2 + $0x40] sm:$0xff]
    %v746 = vld [vmem:[#allocation2 + $0x48] sm:$0xff]
    %v747 = vld [vmem:[#allocation2 + $0x50] sm:$0xff]
    %v748 = vld [vmem:[#allocation2 + $0x58] sm:$0xff]
    %v749 = vld [vmem:[#allocation2 + $0x60] sm:$0xff]
    %v750 = vld [vmem:[#allocation2 + $0x68] sm:$0xff]
    %v751 = vld [vmem:[#allocation2 + $0x70] sm:$0xff]
    %v752 = vld [vmem:[#allocation2 + $0x78] sm:$0xff]
    %v753 = vld [vmem:[#allocation2 + $0x80] sm:$0xff]
    %v754 = vld [vmem:[#allocation2 + $0x88] sm:$0xff]
    %v755 = vld [vmem:[#allocation2 + $0x90] sm:$0xff]
    %v756 = vld [vmem:[#allocation2 + $0x98] sm:$0xff]
    %v757 = vld [vmem:[#allocation2 + $0xa0] sm:$0xff]
    %v758 = vld [vmem:[#allocation2 + $0xa8] sm:$0xff]
    %v759 = vld [vmem:[#allocation2 + $0xb0] sm:$0xff]
    %v760 = vld [vmem:[#allocation2 + $0xb8] sm:$0xff]
    %v761 = vld [vmem:[#allocation2 + $0xc0] sm:$0xff]
    %v762 = vld [vmem:[#allocation2 + $0xc8] sm:$0xff]
    %v763 = vld [vmem:[#allocation2 + $0xd0] sm:$0xff]
    %v764 = vld [vmem:[#allocation2 + $0xd8] sm:$0xff]
    %v765 = vld [vmem:[#allocation2 + $0xe0] sm:$0xff]
    %v766 = vld [vmem:[#allocation2 + $0xe8] sm:$0xff]
    %v767 = vld [vmem:[#allocation2 + $0xf0] sm:$0xff]
    %v768 = vld [vmem:[#allocation2 + $0xf8] sm:$0xff]
    %v769 = vld [vmem:[#allocation2 + $0x100] sm:$0xff]
    %v770 = vld [vmem:[#allocation2 + $0x108] sm:$0xff]
    %v771 = vld [vmem:[#allocation2 + $0x110] sm:$0xff]
    %v772 = vld [vmem:[#allocation2 + $0x118] sm:$0xff]
    %v773 = vld [vmem:[#allocation2 + $0x120] sm:$0xff]
    %v774 = vld [vmem:[#allocation2 + $0x128] sm:$0xff]
    %v775 = vld [vmem:[#allocation2 + $0x130] sm:$0xff]
    %v776 = vld [vmem:[#allocation2 + $0x138] sm:$0xff]
    %v777 = vld [vmem:[#allocation2 + $0x140] sm:$0xff]
    %v778 = vld [vmem:[#allocation2 + $0x148] sm:$0xff]
    %v779 = vld [vmem:[#allocation2 + $0x150] sm:$0xff]
    %v780 = vld [vmem:[#allocation2 + $0x158] sm:$0xff]
    %v781 = vld [vmem:[#allocation2 + $0x160] sm:$0xff]
    %v782 = vld [vmem:[#allocation2 + $0x168] sm:$0xff]
    %v783 = vld [vmem:[#allocation2 + $0x170] sm:$0xff]
    %v784 = vld [vmem:[#allocation2 + $0x178] sm:$0xff]
    %v785 = vld [vmem:[#allocation2 + $0x180] sm:$0xff]
    %v786 = vld [vmem:[#allocation2 + $0x188] sm:$0xff]
    %v787 = vld [vmem:[#allocation2 + $0x190] sm:$0xff]
    %v788 = vld [vmem:[#allocation2 + $0x198] sm:$0xff]
    %v789 = vld [vmem:[#allocation2 + $0x1a0] sm:$0xff]
    %v790 = vld [vmem:[#allocation2 + $0x1a8] sm:$0xff]
    %v791 = vld [vmem:[#allocation2 + $0x1b0] sm:$0xff]
    %v792 = vld [vmem:[#allocation2 + $0x1b8] sm:$0xff]
    %v793 = vld [vmem:[#allocation2 + $0x1c0] sm:$0xff]
    %v794 = vld [vmem:[#allocation2 + $0x1c8] sm:$0xff]
    %v795 = vld [vmem:[#allocation2 + $0x1d0] sm:$0xff]
    %v796 = vld [vmem:[#allocation2 + $0x1d8] sm:$0xff]
    %v797 = vld [vmem:[#allocation2 + $0x1e0] sm:$0xff]
    %v798 = vld [vmem:[#allocation2 + $0x1e8] sm:$0xff]
    %v799 = vld [vmem:[#allocation2 + $0x1f0] sm:$0xff]
    %v800 = vld [vmem:[#allocation2 + $0x1f8] sm:$0xff]
    %v801 = vld [vmem:[#allocation3] sm:$0xff]
    %v802 = vld [vmem:[#allocation3 + $0x8] sm:$0xff]
    %v803 = vld [vmem:[#allocation3 + $0x10] sm:$0xff]
    %v804 = vld [vmem:[#allocation3 + $0x18] sm:$0xff]
    %v805 = vld [vmem:[#allocation3 + $0x20] sm:$0xff]
    %v806 = vld [vmem:[#allocation3 + $0x28] sm:$0xff]
    %v807 = vld [vmem:[#allocation3 + $0x30] sm:$0xff]
    %v808 = vld [vmem:[#allocation3 + $0x38] sm:$0xff]
    %v809 = vld [vmem:[#allocation3 + $0x40] sm:$0xff]
    %v810 = vld [vmem:[#allocation3 + $0x48] sm:$0xff]
    %v811 = vld [vmem:[#allocation3 + $0x50] sm:$0xff]
    %v812 = vld [vmem:[#allocation3 + $0x58] sm:$0xff]
    %v813 = vld [vmem:[#allocation3 + $0x60] sm:$0xff]
    %v814 = vld [vmem:[#allocation3 + $0x68] sm:$0xff]
    %v815 = vld [vmem:[#allocation3 + $0x70] sm:$0xff]
    %v816 = vld [vmem:[#allocation3 + $0x78] sm:$0xff]
    %v817 = vld [vmem:[#allocation3 + $0x80] sm:$0xff]
    %v818 = vld [vmem:[#allocation3 + $0x88] sm:$0xff]
    %v819 = vld [vmem:[#allocation3 + $0x90] sm:$0xff]
    %v820 = vld [vmem:[#allocation3 + $0x98] sm:$0xff]
    %v821 = vld [vmem:[#allocation3 + $0xa0] sm:$0xff]
    %v822 = vld [vmem:[#allocation3 + $0xa8] sm:$0xff]
    %v823 = vld [vmem:[#allocation3 + $0xb0] sm:$0xff]
    %v824 = vld [vmem:[#allocation3 + $0xb8] sm:$0xff]
    %v825 = vld [vmem:[#allocation3 + $0xc0] sm:$0xff]
    %v826 = vld [vmem:[#allocation3 + $0xc8] sm:$0xff]
    %v827 = vld [vmem:[#allocation3 + $0xd0] sm:$0xff]
    %v828 = vld [vmem:[#allocation3 + $0xd8] sm:$0xff]
    %v829 = vld [vmem:[#allocation3 + $0xe0] sm:$0xff]
    %v830 = vld [vmem:[#allocation3 + $0xe8] sm:$0xff]
    %v831 = vld [vmem:[#allocation3 + $0xf0] sm:$0xff]
    %v832 = vld [vmem:[#allocation3 + $0xf8] sm:$0xff]
    %v833 = vld [vmem:[#allocation3 + $0x100] sm:$0xff]
    %v834 = vld [vmem:[#allocation3 + $0x108] sm:$0xff]
    %v835 = vld [vmem:[#allocation3 + $0x110] sm:$0xff]
    %v836 = vld [vmem:[#allocation3 + $0x118] sm:$0xff]
    %v837 = vld [vmem:[#allocation3 + $0x120] sm:$0xff]
    %v838 = vld [vmem:[#allocation3 + $0x128] sm:$0xff]
    %v839 = vld [vmem:[#allocation3 + $0x130] sm:$0xff]
    %v840 = vld [vmem:[#allocation3 + $0x138] sm:$0xff]
    %v841 = vld [vmem:[#allocation3 + $0x140] sm:$0xff]
    %v842 = vld [vmem:[#allocation3 + $0x148] sm:$0xff]
    %v843 = vld [vmem:[#allocation3 + $0x150] sm:$0xff]
    %v844 = vld [vmem:[#allocation3 + $0x158] sm:$0xff]
    %v845 = vld [vmem:[#allocation3 + $0x160] sm:$0xff]
    %v846 = vld [vmem:[#allocation3 + $0x168] sm:$0xff]
    %v847 = vld [vmem:[#allocation3 + $0x170] sm:$0xff]
    %v848 = vld [vmem:[#allocation3 + $0x178] sm:$0xff]
    %v849 = vld [vmem:[#allocation3 + $0x180] sm:$0xff]
    %v850 = vld [vmem:[#allocation3 + $0x188] sm:$0xff]
    %v851 = vld [vmem:[#allocation3 + $0x190] sm:$0xff]
    %v852 = vld [vmem:[#allocation3 + $0x198] sm:$0xff]
    %v853 = vld [vmem:[#allocation3 + $0x1a0] sm:$0xff]
    %v854 = vld [vmem:[#allocation3 + $0x1a8] sm:$0xff]
    %v855 = vld [vmem:[#allocation3 + $0x1b0] sm:$0xff]
    %v856 = vld [vmem:[#allocation3 + $0x1b8] sm:$0xff]
    %v857 = vld [vmem:[#allocation3 + $0x1c0] sm:$0xff]
    %v858 = vld [vmem:[#allocation3 + $0x1c8] sm:$0xff]
    %v859 = vld [vmem:[#allocation3 + $0x1d0] sm:$0xff]
    %v860 = vld [vmem:[#allocation3 + $0x1d8] sm:$0xff]
    %v861 = vld [vmem:[#allocation3 + $0x1e0] sm:$0xff]
    %v862 = vld [vmem:[#allocation3 + $0x1e8] sm:$0xff]
    %v863 = vld [vmem:[#allocation3 + $0x1f0] sm:$0xff]
    %v864 = vld [vmem:[#allocation3 + $0x1f8] sm:$0xff]
    %v865 = vld [vmem:[#allocation3 + $0x200] sm:$0xff]
    %v866 = vld [vmem:[#allocation3 + $0x208] sm:$0xff]
    %v867 = vld [vmem:[#allocation3 + $0x210] sm:$0xff]
    %v868 = vld [vmem:[#allocation3 + $0x218] sm:$0xff]
    %v869 = vld [vmem:[#allocation3 + $0x220] sm:$0xff]
    %v870 = vld [vmem:[#allocation3 + $0x228] sm:$0xff]
    %v871 = vld [vmem:[#allocation3 + $0x230] sm:$0xff]
    %v872 = vld [vmem:[#allocation3 + $0x238] sm:$0xff]
    %v873 = vld [vmem:[#allocation3 + $0x240] sm:$0xff]
    %v874 = vld [vmem:[#allocation3 + $0x248] sm:$0xff]
    %v875 = vld [vmem:[#allocation3 + $0x250] sm:$0xff]
    %v876 = vld [vmem:[#allocation3 + $0x258] sm:$0xff]
    %v877 = vld [vmem:[#allocation3 + $0x260] sm:$0xff]
    %v878 = vld [vmem:[#allocation3 + $0x268] sm:$0xff]
    %v879 = vld [vmem:[#allocation3 + $0x270] sm:$0xff]
    %v880 = vld [vmem:[#allocation3 + $0x278] sm:$0xff]
    %v881 = vld [vmem:[#allocation3 + $0x280] sm:$0xff]
    %v882 = vld [vmem:[#allocation3 + $0x288] sm:$0xff]
    %v883 = vld [vmem:[#allocation3 + $0x290] sm:$0xff]
    %v884 = vld [vmem:[#allocation3 + $0x298] sm:$0xff]
    %v885 = vld [vmem:[#allocation3 + $0x2a0] sm:$0xff]
    %v886 = vld [vmem:[#allocation3 + $0x2a8] sm:$0xff]
    %v887 = vld [vmem:[#allocation3 + $0x2b0] sm:$0xff]
    %v888 = vld [vmem:[#allocation3 + $0x2b8] sm:$0xff]
    %v889 = vld [vmem:[#allocation3 + $0x2c0] sm:$0xff]
    %v890 = vld [vmem:[#allocation3 + $0x2c8] sm:$0xff]
    %v891 = vld [vmem:[#allocation3 + $0x2d0] sm:$0xff]
    %v892 = vld [vmem:[#allocation3 + $0x2d8] sm:$0xff]
    %v893 = vld [vmem:[#allocation3 + $0x2e0] sm:$0xff]
    %v894 = vld [vmem:[#allocation3 + $0x2e8] sm:$0xff]
    %v895 = vld [vmem:[#allocation3 + $0x2f0] sm:$0xff]
    %v896 = vld [vmem:[#allocation3 + $0x2f8] sm:$0xff]
    %v897 = vld [vmem:[#allocation3 + $0x300] sm:$0xff]
    %v898 = vld [vmem:[#allocation3 + $0x308] sm:$0xff]
    %v899 = vld [vmem:[#allocation3 + $0x310] sm:$0xff]
    %v900 = vld [vmem:[#allocation3 + $0x318] sm:$0xff]
    %v901 = vld [vmem:[#allocation3 + $0x320] sm:$0xff]
    %v902 = vld [vmem:[#allocation3 + $0x328] sm:$0xff]
    %v903 = vld [vmem:[#allocation3 + $0x330] sm:$0xff]
    %v904 = vld [vmem:[#allocation3 + $0x338] sm:$0xff]
    %v905 = vld [vmem:[#allocation3 + $0x340] sm:$0xff]
    %v906 = vld [vmem:[#allocation3 + $0x348] sm:$0xff]
    %v907 = vld [vmem:[#allocation3 + $0x350] sm:$0xff]
    %v908 = vld [vmem:[#allocation3 + $0x358] sm:$0xff]
    %v909 = vld [vmem:[#allocation3 + $0x360] sm:$0xff]
    %v910 = vld [vmem:[#allocation3 + $0x368] sm:$0xff]
    %v911 = vld [vmem:[#allocation3 + $0x370] sm:$0xff]
    %v912 = vld [vmem:[#allocation3 + $0x378] sm:$0xff]
    %v913 = vld [vmem:[#allocation3 + $0x380] sm:$0xff]
    %v914 = vld [vmem:[#allocation3 + $0x388] sm:$0xff]
    %v915 = vld [vmem:[#allocation3 + $0x390] sm:$0xff]
    %v916 = vld [vmem:[#allocation3 + $0x398] sm:$0xff]
    %v917 = vld [vmem:[#allocation3 + $0x3a0] sm:$0xff]
    %v918 = vld [vmem:[#allocation3 + $0x3a8] sm:$0xff]
    %v919 = vld [vmem:[#allocation3 + $0x3b0] sm:$0xff]
    %v920 = vld [vmem:[#allocation3 + $0x3b8] sm:$0xff]
    %v921 = vld [vmem:[#allocation3 + $0x3c0] sm:$0xff]
    %v922 = vld [vmem:[#allocation3 + $0x3c8] sm:$0xff]
    %v923 = vld [vmem:[#allocation3 + $0x3d0] sm:$0xff]
    %v924 = vld [vmem:[#allocation3 + $0x3d8] sm:$0xff]
    %v925 = vld [vmem:[#allocation3 + $0x3e0] sm:$0xff]
    %v926 = vld [vmem:[#allocation3 + $0x3e8] sm:$0xff]
    %v927 = vld [vmem:[#allocation3 + $0x3f0] sm:$0xff]
    %v928 = vld [vmem:[#allocation3 + $0x3f8] sm:$0xff]
    %v929 = vpack.c.bf16 %v486, %v483
    %v930 = vpack.c.bf16 %v494, %v491
    %v931 = vpack.c.bf16 %v502, %v499
    %v932 = vpack.c.bf16 %v510, %v507
    %v933 = vpack.c.bf16 %v518, %v515
    %v934 = vpack.c.bf16 %v526, %v523
    %v935 = vpack.c.bf16 %v534, %v531
    %v936 = vpack.c.bf16 %v542, %v539
    %v937 = vpack.c.bf16 %v550, %v547
    %v938 = vpack.c.bf16 %v558, %v555
    %v939 = vpack.c.bf16 %v566, %v563
    %v940 = vpack.c.bf16 %v574, %v571
    %v941 = vpack.c.bf16 %v582, %v579
    %v942 = vpack.c.bf16 %v590, %v587
    %v943 = vpack.c.bf16 %v598, %v595
    %v944 = vpack.c.bf16 %v606, %v603
    %v945 = vpack.c.bf16 %v614, %v611
    %v946 = vpack.c.bf16 %v622, %v619
    %v947 = vpack.c.bf16 %v630, %v627
    %v948 = vpack.c.bf16 %v638, %v635
    %v949 = vpack.c.bf16 %v646, %v643
    %v950 = vpack.c.bf16 %v654, %v651
    %v951 = vpack.c.bf16 %v662, %v659
    %v952 = vpack.c.bf16 %v670, %v667
    %v953 = vpack.c.bf16 %v678, %v675
    %v954 = vpack.c.bf16 %v686, %v683
    %v955 = vpack.c.bf16 %v694, %v691
    %v956 = vpack.c.bf16 %v702, %v699
    %v957 = vpack.c.bf16 %v710, %v707
    %v958 = vpack.c.bf16 %v718, %v715
    %v959 = vpack.c.bf16 %v726, %v723
    %v960 = vpack.c.bf16 %v734, %v731
    %v1089 = vunpack.c.l.b16 %v801
    %v1090 = vunpack.c.h.b16 %v801
    %v1091 = vunpack.c.l.b16 %v802
    %v1092 = vunpack.c.h.b16 %v802
    %v1093 = vunpack.c.l.b16 %v803
    %v1094 = vunpack.c.h.b16 %v803
    %v1095 = vunpack.c.l.b16 %v804
    %v1096 = vunpack.c.h.b16 %v804
    %v1097 = vunpack.c.l.b16 %v805
    %v1098 = vunpack.c.h.b16 %v805
    %v1099 = vunpack.c.l.b16 %v806
    %v1100 = vunpack.c.h.b16 %v806
    %v1101 = vunpack.c.l.b16 %v807
    %v1102 = vunpack.c.h.b16 %v807
    %v1103 = vunpack.c.l.b16 %v808
    %v1104 = vunpack.c.h.b16 %v808
    %v1105 = vunpack.c.l.b16 %v809
    %v1106 = vunpack.c.h.b16 %v809
    %v1107 = vunpack.c.l.b16 %v810
    %v1108 = vunpack.c.h.b16 %v810
    %v1109 = vunpack.c.l.b16 %v811
    %v1110 = vunpack.c.h.b16 %v811
    %v1111 = vunpack.c.l.b16 %v812
    %v1112 = vunpack.c.h.b16 %v812
    %v1113 = vunpack.c.l.b16 %v813
    %v1114 = vunpack.c.h.b16 %v813
    %v1115 = vunpack.c.l.b16 %v814
    %v1116 = vunpack.c.h.b16 %v814
    %v1117 = vunpack.c.l.b16 %v815
    %v1118 = vunpack.c.h.b16 %v815
    %v1119 = vunpack.c.l.b16 %v816
    %v1120 = vunpack.c.h.b16 %v816
    %v1121 = vunpack.c.l.b16 %v817
    %v1122 = vunpack.c.h.b16 %v817
    %v1123 = vunpack.c.l.b16 %v818
    %v1124 = vunpack.c.h.b16 %v818
    %v1125 = vunpack.c.l.b16 %v819
    %v1126 = vunpack.c.h.b16 %v819
    %v1127 = vunpack.c.l.b16 %v820
    %v1128 = vunpack.c.h.b16 %v820
    %v1129 = vunpack.c.l.b16 %v821
    %v1130 = vunpack.c.h.b16 %v821
    %v1131 = vunpack.c.l.b16 %v822
    %v1132 = vunpack.c.h.b16 %v822
    %v1133 = vunpack.c.l.b16 %v823
    %v1134 = vunpack.c.h.b16 %v823
    %v1135 = vunpack.c.l.b16 %v824
    %v1136 = vunpack.c.h.b16 %v824
    %v1137 = vunpack.c.l.b16 %v825
    %v1138 = vunpack.c.h.b16 %v825
    %v1139 = vunpack.c.l.b16 %v826
    %v1140 = vunpack.c.h.b16 %v826
    %v1141 = vunpack.c.l.b16 %v827
    %v1142 = vunpack.c.h.b16 %v827
    %v1143 = vunpack.c.l.b16 %v828
    %v1144 = vunpack.c.h.b16 %v828
    %v1145 = vunpack.c.l.b16 %v829
    %v1146 = vunpack.c.h.b16 %v829
    %v1147 = vunpack.c.l.b16 %v830
    %v1148 = vunpack.c.h.b16 %v830
    %v1149 = vunpack.c.l.b16 %v831
    %v1150 = vunpack.c.h.b16 %v831
    %v1151 = vunpack.c.l.b16 %v832
    %v1152 = vunpack.c.h.b16 %v832
    %v1153 = vunpack.c.l.b16 %v833
    %v1154 = vunpack.c.h.b16 %v833
    %v1155 = vunpack.c.l.b16 %v834
    %v1156 = vunpack.c.h.b16 %v834
    %v1157 = vunpack.c.l.b16 %v835
    %v1158 = vunpack.c.h.b16 %v835
    %v1159 = vunpack.c.l.b16 %v836
    %v1160 = vunpack.c.h.b16 %v836
    %v1161 = vunpack.c.l.b16 %v837
    %v1162 = vunpack.c.h.b16 %v837
    %v1163 = vunpack.c.l.b16 %v838
    %v1164 = vunpack.c.h.b16 %v838
    %v1165 = vunpack.c.l.b16 %v839
    %v1166 = vunpack.c.h.b16 %v839
    %v1167 = vunpack.c.l.b16 %v840
    %v1168 = vunpack.c.h.b16 %v840
    %v1169 = vunpack.c.l.b16 %v841
    %v1170 = vunpack.c.h.b16 %v841
    %v1171 = vunpack.c.l.b16 %v842
    %v1172 = vunpack.c.h.b16 %v842
    %v1173 = vunpack.c.l.b16 %v843
    %v1174 = vunpack.c.h.b16 %v843
    %v1175 = vunpack.c.l.b16 %v844
    %v1176 = vunpack.c.h.b16 %v844
    %v1177 = vunpack.c.l.b16 %v845
    %v1178 = vunpack.c.h.b16 %v845
    %v1179 = vunpack.c.l.b16 %v846
    %v1180 = vunpack.c.h.b16 %v846
    %v1181 = vunpack.c.l.b16 %v847
    %v1182 = vunpack.c.h.b16 %v847
    %v1183 = vunpack.c.l.b16 %v848
    %v1184 = vunpack.c.h.b16 %v848
    %v1185 = vunpack.c.l.b16 %v849
    %v1186 = vunpack.c.h.b16 %v849
    %v1187 = vunpack.c.l.b16 %v850
    %v1188 = vunpack.c.h.b16 %v850
    %v1189 = vunpack.c.l.b16 %v851
    %v1190 = vunpack.c.h.b16 %v851
    %v1191 = vunpack.c.l.b16 %v852
    %v1192 = vunpack.c.h.b16 %v852
    %v1193 = vunpack.c.l.b16 %v853
    %v1194 = vunpack.c.h.b16 %v853
    %v1195 = vunpack.c.l.b16 %v854
    %v1196 = vunpack.c.h.b16 %v854
    %v1197 = vunpack.c.l.b16 %v855
    %v1198 = vunpack.c.h.b16 %v855
    %v1199 = vunpack.c.l.b16 %v856
    %v1200 = vunpack.c.h.b16 %v856
    %v1201 = vunpack.c.l.b16 %v857
    %v1202 = vunpack.c.h.b16 %v857
    %v1203 = vunpack.c.l.b16 %v858
    %v1204 = vunpack.c.h.b16 %v858
    %v1205 = vunpack.c.l.b16 %v859
    %v1206 = vunpack.c.h.b16 %v859
    %v1207 = vunpack.c.l.b16 %v860
    %v1208 = vunpack.c.h.b16 %v860
    %v1209 = vunpack.c.l.b16 %v861
    %v1210 = vunpack.c.h.b16 %v861
    %v1211 = vunpack.c.l.b16 %v862
    %v1212 = vunpack.c.h.b16 %v862
    %v1213 = vunpack.c.l.b16 %v863
    %v1214 = vunpack.c.h.b16 %v863
    %v1215 = vunpack.c.l.b16 %v864
    %v1216 = vunpack.c.h.b16 %v864
    %v1217 = vunpack.c.l.b16 %v865
    %v1218 = vunpack.c.h.b16 %v865
    %v1219 = vunpack.c.l.b16 %v866
    %v1220 = vunpack.c.h.b16 %v866
    %v1221 = vunpack.c.l.b16 %v867
    %v1222 = vunpack.c.h.b16 %v867
    %v1223 = vunpack.c.l.b16 %v868
    %v1224 = vunpack.c.h.b16 %v868
    %v1225 = vunpack.c.l.b16 %v869
    %v1226 = vunpack.c.h.b16 %v869
    %v1227 = vunpack.c.l.b16 %v870
    %v1228 = vunpack.c.h.b16 %v870
    %v1229 = vunpack.c.l.b16 %v871
    %v1230 = vunpack.c.h.b16 %v871
    %v1231 = vunpack.c.l.b16 %v872
    %v1232 = vunpack.c.h.b16 %v872
    %v1233 = vunpack.c.l.b16 %v873
    %v1234 = vunpack.c.h.b16 %v873
    %v1235 = vunpack.c.l.b16 %v874
    %v1236 = vunpack.c.h.b16 %v874
    %v1237 = vunpack.c.l.b16 %v875
    %v1238 = vunpack.c.h.b16 %v875
    %v1239 = vunpack.c.l.b16 %v876
    %v1240 = vunpack.c.h.b16 %v876
    %v1241 = vunpack.c.l.b16 %v877
    %v1242 = vunpack.c.h.b16 %v877
    %v1243 = vunpack.c.l.b16 %v878
    %v1244 = vunpack.c.h.b16 %v878
    %v1245 = vunpack.c.l.b16 %v879
    %v1246 = vunpack.c.h.b16 %v879
    %v1247 = vunpack.c.l.b16 %v880
    %v1248 = vunpack.c.h.b16 %v880
    %v1249 = vunpack.c.l.b16 %v881
    %v1250 = vunpack.c.h.b16 %v881
    %v1251 = vunpack.c.l.b16 %v882
    %v1252 = vunpack.c.h.b16 %v882
    %v1253 = vunpack.c.l.b16 %v883
    %v1254 = vunpack.c.h.b16 %v883
    %v1255 = vunpack.c.l.b16 %v884
    %v1256 = vunpack.c.h.b16 %v884
    %v1257 = vunpack.c.l.b16 %v885
    %v1258 = vunpack.c.h.b16 %v885
    %v1259 = vunpack.c.l.b16 %v886
    %v1260 = vunpack.c.h.b16 %v886
    %v1261 = vunpack.c.l.b16 %v887
    %v1262 = vunpack.c.h.b16 %v887
    %v1263 = vunpack.c.l.b16 %v888
    %v1264 = vunpack.c.h.b16 %v888
    %v1265 = vunpack.c.l.b16 %v889
    %v1266 = vunpack.c.h.b16 %v889
    %v1267 = vunpack.c.l.b16 %v890
    %v1268 = vunpack.c.h.b16 %v890
    %v1269 = vunpack.c.l.b16 %v891
    %v1270 = vunpack.c.h.b16 %v891
    %v1271 = vunpack.c.l.b16 %v892
    %v1272 = vunpack.c.h.b16 %v892
    %v1273 = vunpack.c.l.b16 %v893
    %v1274 = vunpack.c.h.b16 %v893
    %v1275 = vunpack.c.l.b16 %v894
    %v1276 = vunpack.c.h.b16 %v894
    %v1277 = vunpack.c.l.b16 %v895
    %v1278 = vunpack.c.h.b16 %v895
    %v1279 = vunpack.c.l.b16 %v896
    %v1280 = vunpack.c.h.b16 %v896
    %v1281 = vunpack.c.l.b16 %v897
    %v1282 = vunpack.c.h.b16 %v897
    %v1283 = vunpack.c.l.b16 %v898
    %v1284 = vunpack.c.h.b16 %v898
    %v1285 = vunpack.c.l.b16 %v899
    %v1286 = vunpack.c.h.b16 %v899
    %v1287 = vunpack.c.l.b16 %v900
    %v1288 = vunpack.c.h.b16 %v900
    %v1289 = vunpack.c.l.b16 %v901
    %v1290 = vunpack.c.h.b16 %v901
    %v1291 = vunpack.c.l.b16 %v902
    %v1292 = vunpack.c.h.b16 %v902
    %v1293 = vunpack.c.l.b16 %v903
    %v1294 = vunpack.c.h.b16 %v903
    %v1295 = vunpack.c.l.b16 %v904
    %v1296 = vunpack.c.h.b16 %v904
    %v1297 = vunpack.c.l.b16 %v905
    %v1298 = vunpack.c.h.b16 %v905
    %v1299 = vunpack.c.l.b16 %v906
    %v1300 = vunpack.c.h.b16 %v906
    %v1301 = vunpack.c.l.b16 %v907
    %v1302 = vunpack.c.h.b16 %v907
    %v1303 = vunpack.c.l.b16 %v908
    %v1304 = vunpack.c.h.b16 %v908
    %v1305 = vunpack.c.l.b16 %v909
    %v1306 = vunpack.c.h.b16 %v909
    %v1307 = vunpack.c.l.b16 %v910
    %v1308 = vunpack.c.h.b16 %v910
    %v1309 = vunpack.c.l.b16 %v911
    %v1310 = vunpack.c.h.b16 %v911
    %v1311 = vunpack.c.l.b16 %v912
    %v1312 = vunpack.c.h.b16 %v912
    %v1313 = vunpack.c.l.b16 %v913
    %v1314 = vunpack.c.h.b16 %v913
    %v1315 = vunpack.c.l.b16 %v914
    %v1316 = vunpack.c.h.b16 %v914
    %v1317 = vunpack.c.l.b16 %v915
    %v1318 = vunpack.c.h.b16 %v915
    %v1319 = vunpack.c.l.b16 %v916
    %v1320 = vunpack.c.h.b16 %v916
    %v1321 = vunpack.c.l.b16 %v917
    %v1322 = vunpack.c.h.b16 %v917
    %v1323 = vunpack.c.l.b16 %v918
    %v1324 = vunpack.c.h.b16 %v918
    %v1325 = vunpack.c.l.b16 %v919
    %v1326 = vunpack.c.h.b16 %v919
    %v1327 = vunpack.c.l.b16 %v920
    %v1328 = vunpack.c.h.b16 %v920
    %v1329 = vunpack.c.l.b16 %v921
    %v1330 = vunpack.c.h.b16 %v921
    %v1331 = vunpack.c.l.b16 %v922
    %v1332 = vunpack.c.h.b16 %v922
    %v1333 = vunpack.c.l.b16 %v923
    %v1334 = vunpack.c.h.b16 %v923
    %v1335 = vunpack.c.l.b16 %v924
    %v1336 = vunpack.c.h.b16 %v924
    %v1337 = vunpack.c.l.b16 %v925
    %v1338 = vunpack.c.h.b16 %v925
    %v1339 = vunpack.c.l.b16 %v926
    %v1340 = vunpack.c.h.b16 %v926
    %v1341 = vunpack.c.l.b16 %v927
    %v1342 = vunpack.c.h.b16 %v927
    %v1343 = vunpack.c.l.b16 %v928
    %v1344 = vunpack.c.h.b16 %v928
    %v1345 = vpack.c.b16 %v1093, %v1089
    %v1346 = vpack.c.b16 %v1094, %v1090
    %v1347 = vpack.c.b16 %v1095, %v1091
    %v1348 = vpack.c.b16 %v1096, %v1092
    %v1349 = vpack.c.b16 %v1101, %v1097
    %v1350 = vpack.c.b16 %v1102, %v1098
    %v1351 = vpack.c.b16 %v1103, %v1099
    %v1352 = vpack.c.b16 %v1104, %v1100
    %v1353 = vpack.c.b16 %v1109, %v1105
    %v1354 = vpack.c.b16 %v1110, %v1106
    %v1355 = vpack.c.b16 %v1111, %v1107
    %v1356 = vpack.c.b16 %v1112, %v1108
    %v1357 = vpack.c.b16 %v1117, %v1113
    %v1358 = vpack.c.b16 %v1118, %v1114
    %v1359 = vpack.c.b16 %v1119, %v1115
    %v1360 = vpack.c.b16 %v1120, %v1116
    %v1361 = vpack.c.b16 %v1125, %v1121
    %v1362 = vpack.c.b16 %v1126, %v1122
    %v1363 = vpack.c.b16 %v1127, %v1123
    %v1364 = vpack.c.b16 %v1128, %v1124
    %v1365 = vpack.c.b16 %v1133, %v1129
    %v1366 = vpack.c.b16 %v1134, %v1130
    %v1367 = vpack.c.b16 %v1135, %v1131
    %v1368 = vpack.c.b16 %v1136, %v1132
    %v1369 = vpack.c.b16 %v1141, %v1137
    %v1370 = vpack.c.b16 %v1142, %v1138
    %v1371 = vpack.c.b16 %v1143, %v1139
    %v1372 = vpack.c.b16 %v1144, %v1140
    %v1373 = vpack.c.b16 %v1149, %v1145
    %v1374 = vpack.c.b16 %v1150, %v1146
    %v1375 = vpack.c.b16 %v1151, %v1147
    %v1376 = vpack.c.b16 %v1152, %v1148
    %v1377 = vpack.c.b16 %v1157, %v1153
    %v1378 = vpack.c.b16 %v1158, %v1154
    %v1379 = vpack.c.b16 %v1159, %v1155
    %v1380 = vpack.c.b16 %v1160, %v1156
    %v1381 = vpack.c.b16 %v1165, %v1161
    %v1382 = vpack.c.b16 %v1166, %v1162
    %v1383 = vpack.c.b16 %v1167, %v1163
    %v1384 = vpack.c.b16 %v1168, %v1164
    %v1385 = vpack.c.b16 %v1173, %v1169
    %v1386 = vpack.c.b16 %v1174, %v1170
    %v1387 = vpack.c.b16 %v1175, %v1171
    %v1388 = vpack.c.b16 %v1176, %v1172
    %v1389 = vpack.c.b16 %v1181, %v1177
    %v1390 = vpack.c.b16 %v1182, %v1178
    %v1391 = vpack.c.b16 %v1183, %v1179
    %v1392 = vpack.c.b16 %v1184, %v1180
    %v1393 = vpack.c.b16 %v1189, %v1185
    %v1394 = vpack.c.b16 %v1190, %v1186
    %v1395 = vpack.c.b16 %v1191, %v1187
    %v1396 = vpack.c.b16 %v1192, %v1188
    %v1397 = vpack.c.b16 %v1197, %v1193
    %v1398 = vpack.c.b16 %v1198, %v1194
    %v1399 = vpack.c.b16 %v1199, %v1195
    %v1400 = vpack.c.b16 %v1200, %v1196
    %v1401 = vpack.c.b16 %v1205, %v1201
    %v1402 = vpack.c.b16 %v1206, %v1202
    %v1403 = vpack.c.b16 %v1207, %v1203
    %v1404 = vpack.c.b16 %v1208, %v1204
    %v1405 = vpack.c.b16 %v1213, %v1209
    %v1406 = vpack.c.b16 %v1214, %v1210
    %v1407 = vpack.c.b16 %v1215, %v1211
    %v1408 = vpack.c.b16 %v1216, %v1212
    %v1409 = vpack.c.b16 %v1221, %v1217
    %v1410 = vpack.c.b16 %v1222, %v1218
    %v1411 = vpack.c.b16 %v1223, %v1219
    %v1412 = vpack.c.b16 %v1224, %v1220
    %v1413 = vpack.c.b16 %v1229, %v1225
    %v1414 = vpack.c.b16 %v1230, %v1226
    %v1415 = vpack.c.b16 %v1231, %v1227
    %v1416 = vpack.c.b16 %v1232, %v1228
    %v1417 = vpack.c.b16 %v1237, %v1233
    %v1418 = vpack.c.b16 %v1238, %v1234
    %v1419 = vpack.c.b16 %v1239, %v1235
    %v1420 = vpack.c.b16 %v1240, %v1236
    %v1421 = vpack.c.b16 %v1245, %v1241
    %v1422 = vpack.c.b16 %v1246, %v1242
    %v1423 = vpack.c.b16 %v1247, %v1243
    %v1424 = vpack.c.b16 %v1248, %v1244
    %v1425 = vpack.c.b16 %v1253, %v1249
    %v1426 = vpack.c.b16 %v1254, %v1250
    %v1427 = vpack.c.b16 %v1255, %v1251
    %v1428 = vpack.c.b16 %v1256, %v1252
    %v1429 = vpack.c.b16 %v1261, %v1257
    %v1430 = vpack.c.b16 %v1262, %v1258
    %v1431 = vpack.c.b16 %v1263, %v1259
    %v1432 = vpack.c.b16 %v1264, %v1260
    %v1433 = vpack.c.b16 %v1269, %v1265
    %v1434 = vpack.c.b16 %v1270, %v1266
    %v1435 = vpack.c.b16 %v1271, %v1267
    %v1436 = vpack.c.b16 %v1272, %v1268
    %v1437 = vpack.c.b16 %v1277, %v1273
    %v1438 = vpack.c.b16 %v1278, %v1274
    %v1439 = vpack.c.b16 %v1279, %v1275
    %v1440 = vpack.c.b16 %v1280, %v1276
    %v1441 = vpack.c.b16 %v1285, %v1281
    %v1442 = vpack.c.b16 %v1286, %v1282
    %v1443 = vpack.c.b16 %v1287, %v1283
    %v1444 = vpack.c.b16 %v1288, %v1284
    %v1445 = vpack.c.b16 %v1293, %v1289
    %v1446 = vpack.c.b16 %v1294, %v1290
    %v1447 = vpack.c.b16 %v1295, %v1291
    %v1448 = vpack.c.b16 %v1296, %v1292
    %v1449 = vpack.c.b16 %v1301, %v1297
    %v1450 = vpack.c.b16 %v1302, %v1298
    %v1451 = vpack.c.b16 %v1303, %v1299
    %v1452 = vpack.c.b16 %v1304, %v1300
    %v1453 = vpack.c.b16 %v1309, %v1305
    %v1454 = vpack.c.b16 %v1310, %v1306
    %v1455 = vpack.c.b16 %v1311, %v1307
    %v1456 = vpack.c.b16 %v1312, %v1308
    %v1457 = vpack.c.b16 %v1317, %v1313
    %v1458 = vpack.c.b16 %v1318, %v1314
    %v1459 = vpack.c.b16 %v1319, %v1315
    %v1460 = vpack.c.b16 %v1320, %v1316
    %v1461 = vpack.c.b16 %v1325, %v1321
    %v1462 = vpack.c.b16 %v1326, %v1322
    %v1463 = vpack.c.b16 %v1327, %v1323
    %v1464 = vpack.c.b16 %v1328, %v1324
    %v1465 = vpack.c.b16 %v1333, %v1329
    %v1466 = vpack.c.b16 %v1334, %v1330
    %v1467 = vpack.c.b16 %v1335, %v1331
    %v1468 = vpack.c.b16 %v1336, %v1332
    %v1469 = vpack.c.b16 %v1341, %v1337
    %v1470 = vpack.c.b16 %v1342, %v1338
    %v1471 = vpack.c.b16 %v1343, %v1339
    %v1472 = vpack.c.b16 %v1344, %v1340
    %1601 = vmatprep.subr.bf16.mxu0 0
    %1602 = vmatpush1.bf16.msra.mxu0 %v929
    %1603 = vmatprep.subr.bf16.mxu0 0
    %1604 = vmatpush1.bf16.msra.mxu0 %v930
    %1605 = vmatprep.subr.bf16.mxu0 0
    %1606 = vmatpush1.bf16.msra.mxu0 %v931
    %1607 = vmatprep.subr.bf16.mxu0 0
    %1608 = vmatpush1.bf16.msra.mxu0 %v932
    %1609 = vmatprep.subr.bf16.mxu0 0
    %1610 = vmatpush1.bf16.msra.mxu0 %v933
    %1611 = vmatprep.subr.bf16.mxu0 0
    %1612 = vmatpush1.bf16.msra.mxu0 %v934
    %1613 = vmatprep.subr.bf16.mxu0 0
    %1614 = vmatpush1.bf16.msra.mxu0 %v935
    %1615 = vmatprep.subr.bf16.mxu0 0
    %1616 = vmatpush1.bf16.msra.mxu0 %v936
    %1617 = vmatprep.subr.bf16.mxu0 0
    %1618 = vmatpush1.bf16.msra.mxu0 %v937
    %1619 = vmatprep.subr.bf16.mxu0 0
    %1620 = vmatpush1.bf16.msra.mxu0 %v938
    %1621 = vmatprep.subr.bf16.mxu0 0
    %1622 = vmatpush1.bf16.msra.mxu0 %v939
    %1623 = vmatprep.subr.bf16.mxu0 0
    %1624 = vmatpush1.bf16.msra.mxu0 %v940
    %1625 = vmatprep.subr.bf16.mxu0 0
    %1626 = vmatpush1.bf16.msra.mxu0 %v941
    %1627 = vmatprep.subr.bf16.mxu0 0
    %1628 = vmatpush1.bf16.msra.mxu0 %v942
    %1629 = vmatprep.subr.bf16.mxu0 0
    %1630 = vmatpush1.bf16.msra.mxu0 %v943
    %1631 = vmatprep.subr.bf16.mxu0 0
    %1632 = vmatpush1.bf16.msra.mxu0 %v944
    %1633 = vmatprep.mubr.bf16.mxu0 %v1346
    %1634 = vmatmul.mubr.bf16.gmra.mrb[0].mxu0 %v1345
    %v1635 = vpop.f32.mrb[0].mxu0
    %v1636 = vadd.f32 0.0, %v1635
    %v1637 = vpop.f32.mrb[0].mxu0
    %v1638 = vpop.f32.mrb[0].mxu0
    %v1639 = vadd.f32 0.0, %v1638
    %v1640 = vpop.f32.mrb[0].mxu0
    %1641 = vmatprep.mubr.bf16.mxu0 %v1350
    %1642 = vmatmul.mubr.bf16.gmra.mrb[0].mxu0 %v1349
    %v1643 = vpop.f32.mrb[0].mxu0
    %v1644 = vadd.f32 0.0, %v1643
    %v1645 = vpop.f32.mrb[0].mxu0
    %v1646 = vpop.f32.mrb[0].mxu0
    %v1647 = vadd.f32 0.0, %v1646
    %v1648 = vpop.f32.mrb[0].mxu0
    %1649 = vmatprep.mubr.bf16.mxu0 %v1354
    %1650 = vmatmul.mubr.bf16.gmra.mrb[0].mxu0 %v1353
    %v1651 = vpop.f32.mrb[0].mxu0
    %v1652 = vadd.f32 0.0, %v1651
    %v1653 = vpop.f32.mrb[0].mxu0
    %v1654 = vpop.f32.mrb[0].mxu0
    %v1655 = vadd.f32 0.0, %v1654
    %v1656 = vpop.f32.mrb[0].mxu0
    %1657 = vmatprep.mubr.bf16.mxu0 %v1358
    %1658 = vmatmul.mubr.bf16.gmra.mrb[0].mxu0 %v1357
    %v1659 = vpop.f32.mrb[0].mxu0
    %v1660 = vadd.f32 0.0, %v1659
    %v1661 = vpop.f32.mrb[0].mxu0
    %v1662 = vpop.f32.mrb[0].mxu0
    %v1663 = vadd.f32 0.0, %v1662
    %v1664 = vpop.f32.mrb[0].mxu0
    %1665 = vmatprep.mubr.bf16.mxu0 %v1362
    %1666 = vmatmul.mubr.bf16.gmra.mrb[0].mxu0 %v1361
    %v1667 = vpop.f32.mrb[0].mxu0
    %v1668 = vadd.f32 0.0, %v1667
    %v1669 = vpop.f32.mrb[0].mxu0
    %v1670 = vpop.f32.mrb[0].mxu0
    %v1671 = vadd.f32 0.0, %v1670
    %v1672 = vpop.f32.mrb[0].mxu0
    %1673 = vmatprep.mubr.bf16.mxu0 %v1366
    %1674 = vmatmul.mubr.bf16.gmra.mrb[0].mxu0 %v1365
    %v1675 = vpop.f32.mrb[0].mxu0
    %v1676 = vadd.f32 0.0, %v1675
    %v1677 = vpop.f32.mrb[0].mxu0
    %v1678 = vpop.f32.mrb[0].mxu0
    %v1679 = vadd.f32 0.0, %v1678
    %v1680 = vpop.f32.mrb[0].mxu0
    %1681 = vmatprep.mubr.bf16.mxu0 %v1370
    %1682 = vmatmul.mubr.bf16.gmra.mrb[0].mxu0 %v1369
    %v1683 = vpop.f32.mrb[0].mxu0
    %v1684 = vadd.f32 0.0, %v1683
    %v1685 = vpop.f32.mrb[0].mxu0
    %v1686 = vpop.f32.mrb[0].mxu0
    %v1687 = vadd.f32 0.0, %v1686
    %v1688 = vpop.f32.mrb[0].mxu0
    %1689 = vmatprep.mubr.bf16.mxu0 %v1374
    %1690 = vmatmul.mubr.bf16.gmra.mrb[0].mxu0 %v1373
    %v1691 = vpop.f32.mrb[0].mxu0
    %v1692 = vadd.f32 0.0, %v1691
    %v1693 = vpop.f32.mrb[0].mxu0
    %v1694 = vpop.f32.mrb[0].mxu0
    %v1695 = vadd.f32 0.0, %v1694
    %v1696 = vpop.f32.mrb[0].mxu0
    %1697 = vmatprep.mubr.bf16.mxu0 %v1378
    %1698 = vmatmul.mubr.bf16.gmra.mrb[0].mxu0 %v1377
    %v1699 = vpop.f32.mrb[0].mxu0
    %v1700 = vadd.f32 0.0, %v1699
    %v1701 = vpop.f32.mrb[0].mxu0
    %v1702 = vpop.f32.mrb[0].mxu0
    %v1703 = vadd.f32 0.0, %v1702
    %v1704 = vpop.f32.mrb[0].mxu0
    %1705 = vmatprep.mubr.bf16.mxu0 %v1382
    %1706 = vmatmul.mubr.bf16.gmra.mrb[0].mxu0 %v1381
    %v1707 = vpop.f32.mrb[0].mxu0
    %v1708 = vadd.f32 0.0, %v1707
    %v1709 = vpop.f32.mrb[0].mxu0
    %v1710 = vpop.f32.mrb[0].mxu0
    %v1711 = vadd.f32 0.0, %v1710
    %v1712 = vpop.f32.mrb[0].mxu0
    %1713 = vmatprep.mubr.bf16.mxu0 %v1386
    %1714 = vmatmul.mubr.bf16.gmra.mrb[0].mxu0 %v1385
    %v1715 = vpop.f32.mrb[0].mxu0
    %v1716 = vadd.f32 0.0, %v1715
    %v1717 = vpop.f32.mrb[0].mxu0
    %v1718 = vpop.f32.mrb[0].mxu0
    %v1719 = vadd.f32 0.0, %v1718
    %v1720 = vpop.f32.mrb[0].mxu0
    %1721 = vmatprep.mubr.bf16.mxu0 %v1390
    %1722 = vmatmul.mubr.bf16.gmra.mrb[0].mxu0 %v1389
    %v1723 = vpop.f32.mrb[0].mxu0
    %v1724 = vadd.f32 0.0, %v1723
    %v1725 = vpop.f32.mrb[0].mxu0
    %v1726 = vpop.f32.mrb[0].mxu0
    %v1727 = vadd.f32 0.0, %v1726
    %v1728 = vpop.f32.mrb[0].mxu0
    %1729 = vmatprep.mubr.bf16.mxu0 %v1394
    %1730 = vmatmul.mubr.bf16.gmra.mrb[0].mxu0 %v1393
    %v1731 = vpop.f32.mrb[0].mxu0
    %v1732 = vadd.f32 0.0, %v1731
    %v1733 = vpop.f32.mrb[0].mxu0
    %v1734 = vpop.f32.mrb[0].mxu0
    %v1735 = vadd.f32 0.0, %v1734
    %v1736 = vpop.f32.mrb[0].mxu0
    %1737 = vmatprep.mubr.bf16.mxu0 %v1398
    %1738 = vmatmul.mubr.bf16.gmra.mrb[0].mxu0 %v1397
    %v1739 = vpop.f32.mrb[0].mxu0
    %v1740 = vadd.f32 0.0, %v1739
    %v1741 = vpop.f32.mrb[0].mxu0
    %v1742 = vpop.f32.mrb[0].mxu0
    %v1743 = vadd.f32 0.0, %v1742
    %v1744 = vpop.f32.mrb[0].mxu0
    %1745 = vmatprep.mubr.bf16.mxu0 %v1402
    %1746 = vmatmul.mubr.bf16.gmra.mrb[0].mxu0 %v1401
    %v1747 = vpop.f32.mrb[0].mxu0
    %v1748 = vadd.f32 0.0, %v1747
    %v1749 = vpop.f32.mrb[0].mxu0
    %v1750 = vpop.f32.mrb[0].mxu0
    %v1751 = vadd.f32 0.0, %v1750
    %v1752 = vpop.f32.mrb[0].mxu0
    %1753 = vmatprep.mubr.bf16.mxu0 %v1406
    %1754 = vmatmul.mubr.bf16.gmra.mrb[0].mxu0 %v1405
    %v1755 = vpop.f32.mrb[0].mxu0
    %v1756 = vadd.f32 0.0, %v1755
    %v1757 = vpop.f32.mrb[0].mxu0
    %v1758 = vpop.f32.mrb[0].mxu0
    %v1759 = vadd.f32 0.0, %v1758
    %v1760 = vpop.f32.mrb[0].mxu0
    %1761 = vmatprep.mubr.bf16.mxu0 %v1410
    %1762 = vmatmul.mubr.bf16.gmra.mrb[0].mxu0 %v1409
    %v1763 = vpop.f32.mrb[0].mxu0
    %v1764 = vadd.f32 0.0, %v1763
    %v1765 = vpop.f32.mrb[0].mxu0
    %v1766 = vpop.f32.mrb[0].mxu0
    %v1767 = vadd.f32 0.0, %v1766
    %v1768 = vpop.f32.mrb[0].mxu0
    %1769 = vmatprep.mubr.bf16.mxu0 %v1414
    %1770 = vmatmul.mubr.bf16.gmra.mrb[0].mxu0 %v1413
    %v1771 = vpop.f32.mrb[0].mxu0
    %v1772 = vadd.f32 0.0, %v1771
    %v1773 = vpop.f32.mrb[0].mxu0
    %v1774 = vpop.f32.mrb[0].mxu0
    %v1775 = vadd.f32 0.0, %v1774
    %v1776 = vpop.f32.mrb[0].mxu0
    %1777 = vmatprep.mubr.bf16.mxu0 %v1418
    %1778 = vmatmul.mubr.bf16.gmra.mrb[0].mxu0 %v1417
    %v1779 = vpop.f32.mrb[0].mxu0
    %v1780 = vadd.f32 0.0, %v1779
    %v1781 = vpop.f32.mrb[0].mxu0
    %v1782 = vpop.f32.mrb[0].mxu0
    %v1783 = vadd.f32 0.0, %v1782
    %v1784 = vpop.f32.mrb[0].mxu0
    %1785 = vmatprep.mubr.bf16.mxu0 %v1422
    %1786 = vmatmul.mubr.bf16.gmra.mrb[0].mxu0 %v1421
    %v1787 = vpop.f32.mrb[0].mxu0
    %v1788 = vadd.f32 0.0, %v1787
    %v1789 = vpop.f32.mrb[0].mxu0
    %v1790 = vpop.f32.mrb[0].mxu0
    %v1791 = vadd.f32 0.0, %v1790
    %v1792 = vpop.f32.mrb[0].mxu0
    %1793 = vmatprep.mubr.bf16.mxu0 %v1426
    %1794 = vmatmul.mubr.bf16.gmra.mrb[0].mxu0 %v1425
    %v1795 = vpop.f32.mrb[0].mxu0
    %v1796 = vadd.f32 0.0, %v1795
    %v1797 = vpop.f32.mrb[0].mxu0
    %v1798 = vpop.f32.mrb[0].mxu0
    %v1799 = vadd.f32 0.0, %v1798
    %v1800 = vpop.f32.mrb[0].mxu0
    %1801 = vmatprep.mubr.bf16.mxu0 %v1430
    %1802 = vmatmul.mubr.bf16.gmra.mrb[0].mxu0 %v1429
    %v1803 = vpop.f32.mrb[0].mxu0
    %v1804 = vadd.f32 0.0, %v1803
    %v1805 = vpop.f32.mrb[0].mxu0
    %v1806 = vpop.f32.mrb[0].mxu0
    %v1807 = vadd.f32 0.0, %v1806
    %v1808 = vpop.f32.mrb[0].mxu0
    %1809 = vmatprep.mubr.bf16.mxu0 %v1434
    %1810 = vmatmul.mubr.bf16.gmra.mrb[0].mxu0 %v1433
    %v1811 = vpop.f32.mrb[0].mxu0
    %v1812 = vadd.f32 0.0, %v1811
    %v1813 = vpop.f32.mrb[0].mxu0
    %v1814 = vpop.f32.mrb[0].mxu0
    %v1815 = vadd.f32 0.0, %v1814
    %v1816 = vpop.f32.mrb[0].mxu0
    %1817 = vmatprep.mubr.bf16.mxu0 %v1438
    %1818 = vmatmul.mubr.bf16.gmra.mrb[0].mxu0 %v1437
    %v1819 = vpop.f32.mrb[0].mxu0
    %v1820 = vadd.f32 0.0, %v1819
    %v1821 = vpop.f32.mrb[0].mxu0
    %v1822 = vpop.f32.mrb[0].mxu0
    %v1823 = vadd.f32 0.0, %v1822
    %v1824 = vpop.f32.mrb[0].mxu0
    %1825 = vmatprep.mubr.bf16.mxu0 %v1442
    %1826 = vmatmul.mubr.bf16.gmra.mrb[0].mxu0 %v1441
    %v1827 = vpop.f32.mrb[0].mxu0
    %v1828 = vadd.f32 0.0, %v1827
    %v1829 = vpop.f32.mrb[0].mxu0
    %v1830 = vpop.f32.mrb[0].mxu0
    %v1831 = vadd.f32 0.0, %v1830
    %v1832 = vpop.f32.mrb[0].mxu0
    %1833 = vmatprep.mubr.bf16.mxu0 %v1446
    %1834 = vmatmul.mubr.bf16.gmra.mrb[0].mxu0 %v1445
    %v1835 = vpop.f32.mrb[0].mxu0
    %v1836 = vadd.f32 0.0, %v1835
    %v1837 = vpop.f32.mrb[0].mxu0
    %v1838 = vpop.f32.mrb[0].mxu0
    %v1839 = vadd.f32 0.0, %v1838
    %v1840 = vpop.f32.mrb[0].mxu0
    %1841 = vmatprep.mubr.bf16.mxu0 %v1450
    %1842 = vmatmul.mubr.bf16.gmra.mrb[0].mxu0 %v1449
    %v1843 = vpop.f32.mrb[0].mxu0
    %v1844 = vadd.f32 0.0, %v1843
    %v1845 = vpop.f32.mrb[0].mxu0
    %v1846 = vpop.f32.mrb[0].mxu0
    %v1847 = vadd.f32 0.0, %v1846
    %v1848 = vpop.f32.mrb[0].mxu0
    %1849 = vmatprep.mubr.bf16.mxu0 %v1454
    %1850 = vmatmul.mubr.bf16.gmra.mrb[0].mxu0 %v1453
    %v1851 = vpop.f32.mrb[0].mxu0
    %v1852 = vadd.f32 0.0, %v1851
    %v1853 = vpop.f32.mrb[0].mxu0
    %v1854 = vpop.f32.mrb[0].mxu0
    %v1855 = vadd.f32 0.0, %v1854
    %v1856 = vpop.f32.mrb[0].mxu0
    %1857 = vmatprep.mubr.bf16.mxu0 %v1458
    %1858 = vmatmul.mubr.bf16.gmra.mrb[0].mxu0 %v1457
    %v1859 = vpop.f32.mrb[0].mxu0
    %v1860 = vadd.f32 0.0, %v1859
    %v1861 = vpop.f32.mrb[0].mxu0
    %v1862 = vpop.f32.mrb[0].mxu0
    %v1863 = vadd.f32 0.0, %v1862
    %v1864 = vpop.f32.mrb[0].mxu0
    %1865 = vmatprep.mubr.bf16.mxu0 %v1462
    %1866 = vmatmul.mubr.bf16.gmra.mrb[0].mxu0 %v1461
    %v1867 = vpop.f32.mrb[0].mxu0
    %v1868 = vadd.f32 0.0, %v1867
    %v1869 = vpop.f32.mrb[0].mxu0
    %v1870 = vpop.f32.mrb[0].mxu0
    %v1871 = vadd.f32 0.0, %v1870
    %v1872 = vpop.f32.mrb[0].mxu0
    %1873 = vmatprep.mubr.bf16.mxu0 %v1466
    %1874 = vmatmul.mubr.bf16.gmra.mrb[0].mxu0 %v1465
    %v1875 = vpop.f32.mrb[0].mxu0
    %v1876 = vadd.f32 0.0, %v1875
    %v1877 = vpop.f32.mrb[0].mxu0
    %v1878 = vpop.f32.mrb[0].mxu0
    %v1879 = vadd.f32 0.0, %v1878
    %v1880 = vpop.f32.mrb[0].mxu0
    %1881 = vmatprep.mubr.bf16.mxu0 %v1470
    %1882 = vmatmul.mubr.bf16.gmra.mrb[0].mxu0 %v1469
    %v1883 = vpop.f32.mrb[0].mxu0
    %v1884 = vadd.f32 0.0, %v1883
    %v1885 = vpop.f32.mrb[0].mxu0
    %v1886 = vpop.f32.mrb[0].mxu0
    %v1887 = vadd.f32 0.0, %v1886
    %v1888 = vpop.f32.mrb[0].mxu0
    %1889 = vdwg.mxu0
    %1890 = vmatprep.subr.bf16.mxu0 0
    %1891 = vmatpush1.bf16.msra.mxu0 %v945
    %1892 = vmatprep.subr.bf16.mxu0 0
    %1893 = vmatpush1.bf16.msra.mxu0 %v946
    %1894 = vmatprep.subr.bf16.mxu0 0
    %1895 = vmatpush1.bf16.msra.mxu0 %v947
    %1896 = vmatprep.subr.bf16.mxu0 0
    %1897 = vmatpush1.bf16.msra.mxu0 %v948
    %1898 = vmatprep.subr.bf16.mxu0 0
    %1899 = vmatpush1.bf16.msra.mxu0 %v949
    %1900 = vmatprep.subr.bf16.mxu0 0
    %1901 = vmatpush1.bf16.msra.mxu0 %v950
    %1902 = vmatprep.subr.bf16.mxu0 0
    %1903 = vmatpush1.bf16.msra.mxu0 %v951
    %1904 = vmatprep.subr.bf16.mxu0 0
    %1905 = vmatpush1.bf16.msra.mxu0 %v952
    %1906 = vmatprep.subr.bf16.mxu0 0
    %1907 = vmatpush1.bf16.msra.mxu0 %v953
    %1908 = vmatprep.subr.bf16.mxu0 0
    %1909 = vmatpush1.bf16.msra.mxu0 %v954
    %1910 = vmatprep.subr.bf16.mxu0 0
    %1911 = vmatpush1.bf16.msra.mxu0 %v955
    %1912 = vmatprep.subr.bf16.mxu0 0
    %1913 = vmatpush1.bf16.msra.mxu0 %v956
    %1914 = vmatprep.subr.bf16.mxu0 0
    %1915 = vmatpush1.bf16.msra.mxu0 %v957
    %1916 = vmatprep.subr.bf16.mxu0 0
    %1917 = vmatpush1.bf16.msra.mxu0 %v958
    %1918 = vmatprep.subr.bf16.mxu0 0
    %1919 = vmatpush1.bf16.msra.mxu0 %v959
    %1920 = vmatprep.subr.bf16.mxu0 0
    %1921 = vmatpush1.bf16.msra.mxu0 %v960
    %1922 = vmatprep.mubr.bf16.mxu0 %v1348
    %1923 = vmatmul.mubr.bf16.gmra.mrb[0].mxu0 %v1347
    %v1924 = vpop.f32.mrb[0].mxu0
    %v1925 = vadd.f32 %v1636, %v1924
    %v1926 = vpop.f32.mrb[0].mxu0
    %v1927 = vpop.f32.mrb[0].mxu0
    %v1928 = vadd.f32 %v1639, %v1927
    %v1929 = vpop.f32.mrb[0].mxu0
    %1930 = vmatprep.mubr.bf16.mxu0 %v1352
    %1931 = vmatmul.mubr.bf16.gmra.mrb[0].mxu0 %v1351
    %v1932 = vpop.f32.mrb[0].mxu0
    %v1933 = vadd.f32 %v1644, %v1932
    %v1934 = vpop.f32.mrb[0].mxu0
    %v1935 = vpop.f32.mrb[0].mxu0
    %v1936 = vadd.f32 %v1647, %v1935
    %v1937 = vpop.f32.mrb[0].mxu0
    %1938 = vmatprep.mubr.bf16.mxu0 %v1356
    %1939 = vmatmul.mubr.bf16.gmra.mrb[0].mxu0 %v1355
    %v1940 = vpop.f32.mrb[0].mxu0
    %v1941 = vadd.f32 %v1652, %v1940
    %v1942 = vpop.f32.mrb[0].mxu0
    %v1943 = vpop.f32.mrb[0].mxu0
    %v1944 = vadd.f32 %v1655, %v1943
    %v1945 = vpop.f32.mrb[0].mxu0
    %1946 = vmatprep.mubr.bf16.mxu0 %v1360
    %1947 = vmatmul.mubr.bf16.gmra.mrb[0].mxu0 %v1359
    %v1948 = vpop.f32.mrb[0].mxu0
    %v1949 = vadd.f32 %v1660, %v1948
    %v1950 = vpop.f32.mrb[0].mxu0
    %v1951 = vpop.f32.mrb[0].mxu0
    %v1952 = vadd.f32 %v1663, %v1951
    %v1953 = vpop.f32.mrb[0].mxu0
    %1954 = vmatprep.mubr.bf16.mxu0 %v1364
    %1955 = vmatmul.mubr.bf16.gmra.mrb[0].mxu0 %v1363
    %v1956 = vpop.f32.mrb[0].mxu0
    %v1957 = vadd.f32 %v1668, %v1956
    %v1958 = vpop.f32.mrb[0].mxu0
    %v1959 = vpop.f32.mrb[0].mxu0
    %v1960 = vadd.f32 %v1671, %v1959
    %v1961 = vpop.f32.mrb[0].mxu0
    %1962 = vmatprep.mubr.bf16.mxu0 %v1368
    %1963 = vmatmul.mubr.bf16.gmra.mrb[0].mxu0 %v1367
    %v1964 = vpop.f32.mrb[0].mxu0
    %v1965 = vadd.f32 %v1676, %v1964
    %v1966 = vpop.f32.mrb[0].mxu0
    %v1967 = vpop.f32.mrb[0].mxu0
    %v1968 = vadd.f32 %v1679, %v1967
    %v1969 = vpop.f32.mrb[0].mxu0
    %1970 = vmatprep.mubr.bf16.mxu0 %v1372
    %1971 = vmatmul.mubr.bf16.gmra.mrb[0].mxu0 %v1371
    %v1972 = vpop.f32.mrb[0].mxu0
    %v1973 = vadd.f32 %v1684, %v1972
    %v1974 = vpop.f32.mrb[0].mxu0
    %v1975 = vpop.f32.mrb[0].mxu0
    %v1976 = vadd.f32 %v1687, %v1975
    %v1977 = vpop.f32.mrb[0].mxu0
    %1978 = vmatprep.mubr.bf16.mxu0 %v1376
    %1979 = vmatmul.mubr.bf16.gmra.mrb[0].mxu0 %v1375
    %v1980 = vpop.f32.mrb[0].mxu0
    %v1981 = vadd.f32 %v1692, %v1980
    %v1982 = vpop.f32.mrb[0].mxu0
    %v1983 = vpop.f32.mrb[0].mxu0
    %v1984 = vadd.f32 %v1695, %v1983
    %v1985 = vpop.f32.mrb[0].mxu0
    %1986 = vmatprep.mubr.bf16.mxu0 %v1380
    %1987 = vmatmul.mubr.bf16.gmra.mrb[0].mxu0 %v1379
    %v1988 = vpop.f32.mrb[0].mxu0
    %v1989 = vadd.f32 %v1700, %v1988
    %v1990 = vpop.f32.mrb[0].mxu0
    %v1991 = vpop.f32.mrb[0].mxu0
    %v1992 = vadd.f32 %v1703, %v1991
    %v1993 = vpop.f32.mrb[0].mxu0
    %1994 = vmatprep.mubr.bf16.mxu0 %v1384
    %1995 = vmatmul.mubr.bf16.gmra.mrb[0].mxu0 %v1383
    %v1996 = vpop.f32.mrb[0].mxu0
    %v1997 = vadd.f32 %v1708, %v1996
    %v1998 = vpop.f32.mrb[0].mxu0
    %v1999 = vpop.f32.mrb[0].mxu0
    %v2000 = vadd.f32 %v1711, %v1999
    %v2001 = vpop.f32.mrb[0].mxu0
    %2002 = vmatprep.mubr.bf16.mxu0 %v1388
    %2003 = vmatmul.mubr.bf16.gmra.mrb[0].mxu0 %v1387
    %v2004 = vpop.f32.mrb[0].mxu0
    %v2005 = vadd.f32 %v1716, %v2004
    %v2006 = vpop.f32.mrb[0].mxu0
    %v2007 = vpop.f32.mrb[0].mxu0
    %v2008 = vadd.f32 %v1719, %v2007
    %v2009 = vpop.f32.mrb[0].mxu0
    %2010 = vmatprep.mubr.bf16.mxu0 %v1392
    %2011 = vmatmul.mubr.bf16.gmra.mrb[0].mxu0 %v1391
    %v2012 = vpop.f32.mrb[0].mxu0
    %v2013 = vadd.f32 %v1724, %v2012
    %v2014 = vpop.f32.mrb[0].mxu0
    %v2015 = vpop.f32.mrb[0].mxu0
    %v2016 = vadd.f32 %v1727, %v2015
    %v2017 = vpop.f32.mrb[0].mxu0
    %2018 = vmatprep.mubr.bf16.mxu0 %v1396
    %2019 = vmatmul.mubr.bf16.gmra.mrb[0].mxu0 %v1395
    %v2020 = vpop.f32.mrb[0].mxu0
    %v2021 = vadd.f32 %v1732, %v2020
    %v2022 = vpop.f32.mrb[0].mxu0
    %v2023 = vpop.f32.mrb[0].mxu0
    %v2024 = vadd.f32 %v1735, %v2023
    %v2025 = vpop.f32.mrb[0].mxu0
    %2026 = vmatprep.mubr.bf16.mxu0 %v1400
    %2027 = vmatmul.mubr.bf16.gmra.mrb[0].mxu0 %v1399
    %v2028 = vpop.f32.mrb[0].mxu0
    %v2029 = vadd.f32 %v1740, %v2028
    %v2030 = vpop.f32.mrb[0].mxu0
    %v2031 = vpop.f32.mrb[0].mxu0
    %v2032 = vadd.f32 %v1743, %v2031
    %v2033 = vpop.f32.mrb[0].mxu0
    %2034 = vmatprep.mubr.bf16.mxu0 %v1404
    %2035 = vmatmul.mubr.bf16.gmra.mrb[0].mxu0 %v1403
    %v2036 = vpop.f32.mrb[0].mxu0
    %v2037 = vadd.f32 %v1748, %v2036
    %v2038 = vpop.f32.mrb[0].mxu0
    %v2039 = vpop.f32.mrb[0].mxu0
    %v2040 = vadd.f32 %v1751, %v2039
    %v2041 = vpop.f32.mrb[0].mxu0
    %2042 = vmatprep.mubr.bf16.mxu0 %v1408
    %2043 = vmatmul.mubr.bf16.gmra.mrb[0].mxu0 %v1407
    %v2044 = vpop.f32.mrb[0].mxu0
    %v2045 = vadd.f32 %v1756, %v2044
    %v2046 = vpop.f32.mrb[0].mxu0
    %v2047 = vpop.f32.mrb[0].mxu0
    %v2048 = vadd.f32 %v1759, %v2047
    %v2049 = vpop.f32.mrb[0].mxu0
    %2050 = vmatprep.mubr.bf16.mxu0 %v1412
    %2051 = vmatmul.mubr.bf16.gmra.mrb[0].mxu0 %v1411
    %v2052 = vpop.f32.mrb[0].mxu0
    %v2053 = vadd.f32 %v1764, %v2052
    %v2054 = vpop.f32.mrb[0].mxu0
    %v2055 = vpop.f32.mrb[0].mxu0
    %v2056 = vadd.f32 %v1767, %v2055
    %v2057 = vpop.f32.mrb[0].mxu0
    %2058 = vmatprep.mubr.bf16.mxu0 %v1416
    %2059 = vmatmul.mubr.bf16.gmra.mrb[0].mxu0 %v1415
    %v2060 = vpop.f32.mrb[0].mxu0
    %v2061 = vadd.f32 %v1772, %v2060
    %v2062 = vpop.f32.mrb[0].mxu0
    %v2063 = vpop.f32.mrb[0].mxu0
    %v2064 = vadd.f32 %v1775, %v2063
    %v2065 = vpop.f32.mrb[0].mxu0
    %2066 = vmatprep.mubr.bf16.mxu0 %v1420
    %2067 = vmatmul.mubr.bf16.gmra.mrb[0].mxu0 %v1419
    %v2068 = vpop.f32.mrb[0].mxu0
    %v2069 = vadd.f32 %v1780, %v2068
    %v2070 = vpop.f32.mrb[0].mxu0
    %v2071 = vpop.f32.mrb[0].mxu0
    %v2072 = vadd.f32 %v1783, %v2071
    %v2073 = vpop.f32.mrb[0].mxu0
    %2074 = vmatprep.mubr.bf16.mxu0 %v1424
    %2075 = vmatmul.mubr.bf16.gmra.mrb[0].mxu0 %v1423
    %v2076 = vpop.f32.mrb[0].mxu0
    %v2077 = vadd.f32 %v1788, %v2076
    %v2078 = vpop.f32.mrb[0].mxu0
    %v2079 = vpop.f32.mrb[0].mxu0
    %v2080 = vadd.f32 %v1791, %v2079
    %v2081 = vpop.f32.mrb[0].mxu0
    %2082 = vmatprep.mubr.bf16.mxu0 %v1428
    %2083 = vmatmul.mubr.bf16.gmra.mrb[0].mxu0 %v1427
    %v2084 = vpop.f32.mrb[0].mxu0
    %v2085 = vadd.f32 %v1796, %v2084
    %v2086 = vpop.f32.mrb[0].mxu0
    %v2087 = vpop.f32.mrb[0].mxu0
    %v2088 = vadd.f32 %v1799, %v2087
    %v2089 = vpop.f32.mrb[0].mxu0
    %2090 = vmatprep.mubr.bf16.mxu0 %v1432
    %2091 = vmatmul.mubr.bf16.gmra.mrb[0].mxu0 %v1431
    %v2092 = vpop.f32.mrb[0].mxu0
    %v2093 = vadd.f32 %v1804, %v2092
    %v2094 = vpop.f32.mrb[0].mxu0
    %v2095 = vpop.f32.mrb[0].mxu0
    %v2096 = vadd.f32 %v1807, %v2095
    %v2097 = vpop.f32.mrb[0].mxu0
    %2098 = vmatprep.mubr.bf16.mxu0 %v1436
    %2099 = vmatmul.mubr.bf16.gmra.mrb[0].mxu0 %v1435
    %v2100 = vpop.f32.mrb[0].mxu0
    %v2101 = vadd.f32 %v1812, %v2100
    %v2102 = vpop.f32.mrb[0].mxu0
    %v2103 = vpop.f32.mrb[0].mxu0
    %v2104 = vadd.f32 %v1815, %v2103
    %v2105 = vpop.f32.mrb[0].mxu0
    %2106 = vmatprep.mubr.bf16.mxu0 %v1440
    %2107 = vmatmul.mubr.bf16.gmra.mrb[0].mxu0 %v1439
    %v2108 = vpop.f32.mrb[0].mxu0
    %v2109 = vadd.f32 %v1820, %v2108
    %v2110 = vpop.f32.mrb[0].mxu0
    %v2111 = vpop.f32.mrb[0].mxu0
    %v2112 = vadd.f32 %v1823, %v2111
    %v2113 = vpop.f32.mrb[0].mxu0
    %2114 = vmatprep.mubr.bf16.mxu0 %v1444
    %2115 = vmatmul.mubr.bf16.gmra.mrb[0].mxu0 %v1443
    %v2116 = vpop.f32.mrb[0].mxu0
    %v2117 = vadd.f32 %v1828, %v2116
    %v2118 = vpop.f32.mrb[0].mxu0
    %v2119 = vpop.f32.mrb[0].mxu0
    %v2120 = vadd.f32 %v1831, %v2119
    %v2121 = vpop.f32.mrb[0].mxu0
    %2122 = vmatprep.mubr.bf16.mxu0 %v1448
    %2123 = vmatmul.mubr.bf16.gmra.mrb[0].mxu0 %v1447
    %v2124 = vpop.f32.mrb[0].mxu0
    %v2125 = vadd.f32 %v1836, %v2124
    %v2126 = vpop.f32.mrb[0].mxu0
    %v2127 = vpop.f32.mrb[0].mxu0
    %v2128 = vadd.f32 %v1839, %v2127
    %v2129 = vpop.f32.mrb[0].mxu0
    %2130 = vmatprep.mubr.bf16.mxu0 %v1452
    %2131 = vmatmul.mubr.bf16.gmra.mrb[0].mxu0 %v1451
    %v2132 = vpop.f32.mrb[0].mxu0
    %v2133 = vadd.f32 %v1844, %v2132
    %v2134 = vpop.f32.mrb[0].mxu0
    %v2135 = vpop.f32.mrb[0].mxu0
    %v2136 = vadd.f32 %v1847, %v2135
    %v2137 = vpop.f32.mrb[0].mxu0
    %2138 = vmatprep.mubr.bf16.mxu0 %v1456
    %2139 = vmatmul.mubr.bf16.gmra.mrb[0].mxu0 %v1455
    %v2140 = vpop.f32.mrb[0].mxu0
    %v2141 = vadd.f32 %v1852, %v2140
    %v2142 = vpop.f32.mrb[0].mxu0
    %v2143 = vpop.f32.mrb[0].mxu0
    %v2144 = vadd.f32 %v1855, %v2143
    %v2145 = vpop.f32.mrb[0].mxu0
    %2146 = vmatprep.mubr.bf16.mxu0 %v1460
    %2147 = vmatmul.mubr.bf16.gmra.mrb[0].mxu0 %v1459
    %v2148 = vpop.f32.mrb[0].mxu0
    %v2149 = vadd.f32 %v1860, %v2148
    %v2150 = vpop.f32.mrb[0].mxu0
    %v2151 = vpop.f32.mrb[0].mxu0
    %v2152 = vadd.f32 %v1863, %v2151
    %v2153 = vpop.f32.mrb[0].mxu0
    %2154 = vmatprep.mubr.bf16.mxu0 %v1464
    %2155 = vmatmul.mubr.bf16.gmra.mrb[0].mxu0 %v1463
    %v2156 = vpop.f32.mrb[0].mxu0
    %v2157 = vadd.f32 %v1868, %v2156
    %v2158 = vpop.f32.mrb[0].mxu0
    %v2159 = vpop.f32.mrb[0].mxu0
    %v2160 = vadd.f32 %v1871, %v2159
    %v2161 = vpop.f32.mrb[0].mxu0
    %2162 = vmatprep.mubr.bf16.mxu0 %v1468
    %2163 = vmatmul.mubr.bf16.gmra.mrb[0].mxu0 %v1467
    %v2164 = vpop.f32.mrb[0].mxu0
    %v2165 = vadd.f32 %v1876, %v2164
    %v2166 = vpop.f32.mrb[0].mxu0
    %v2167 = vpop.f32.mrb[0].mxu0
    %v2168 = vadd.f32 %v1879, %v2167
    %v2169 = vpop.f32.mrb[0].mxu0
    %2170 = vmatprep.mubr.bf16.mxu0 %v1472
    %2171 = vmatmul.mubr.bf16.gmra.mrb[0].mxu0 %v1471
    %v2172 = vpop.f32.mrb[0].mxu0
    %v2173 = vadd.f32 %v1884, %v2172
    %v2174 = vpop.f32.mrb[0].mxu0
    %v2175 = vpop.f32.mrb[0].mxu0
    %v2176 = vadd.f32 %v1887, %v2175
    %v2177 = vpop.f32.mrb[0].mxu0
    %2178 = vdwg.mxu0
    %v2179 = vadd.f32 %v737, %v1925
    %v2180 = vadd.f32 %v738, %v1928
    %v2181 = vadd.f32 %v739, %v1933
    %v2182 = vadd.f32 %v740, %v1936
    %v2183 = vadd.f32 %v741, %v1941
    %v2184 = vadd.f32 %v742, %v1944
    %v2185 = vadd.f32 %v743, %v1949
    %v2186 = vadd.f32 %v744, %v1952
    %v2187 = vadd.f32 %v745, %v1957
    %v2188 = vadd.f32 %v746, %v1960
    %v2189 = vadd.f32 %v747, %v1965
    %v2190 = vadd.f32 %v748, %v1968
    %v2191 = vadd.f32 %v749, %v1973
    %v2192 = vadd.f32 %v750, %v1976
    %v2193 = vadd.f32 %v751, %v1981
    %v2194 = vadd.f32 %v752, %v1984
    %v2195 = vadd.f32 %v753, %v1989
    %v2196 = vadd.f32 %v754, %v1992
    %v2197 = vadd.f32 %v755, %v1997
    %v2198 = vadd.f32 %v756, %v2000
    %v2199 = vadd.f32 %v757, %v2005
    %v2200 = vadd.f32 %v758, %v2008
    %v2201 = vadd.f32 %v759, %v2013
    %v2202 = vadd.f32 %v760, %v2016
    %v2203 = vadd.f32 %v761, %v2021
    %v2204 = vadd.f32 %v762, %v2024
    %v2205 = vadd.f32 %v763, %v2029
    %v2206 = vadd.f32 %v764, %v2032
    %v2207 = vadd.f32 %v765, %v2037
    %v2208 = vadd.f32 %v766, %v2040
    %v2209 = vadd.f32 %v767, %v2045
    %v2210 = vadd.f32 %v768, %v2048
    %v2211 = vadd.f32 %v769, %v2053
    %v2212 = vadd.f32 %v770, %v2056
    %v2213 = vadd.f32 %v771, %v2061
    %v2214 = vadd.f32 %v772, %v2064
    %v2215 = vadd.f32 %v773, %v2069
    %v2216 = vadd.f32 %v774, %v2072
    %v2217 = vadd.f32 %v775, %v2077
    %v2218 = vadd.f32 %v776, %v2080
    %v2219 = vadd.f32 %v777, %v2085
    %v2220 = vadd.f32 %v778, %v2088
    %v2221 = vadd.f32 %v779, %v2093
    %v2222 = vadd.f32 %v780, %v2096
    %v2223 = vadd.f32 %v781, %v2101
    %v2224 = vadd.f32 %v782, %v2104
    %v2225 = vadd.f32 %v783, %v2109
    %v2226 = vadd.f32 %v784, %v2112
    %v2227 = vadd.f32 %v785, %v2117
    %v2228 = vadd.f32 %v786, %v2120
    %v2229 = vadd.f32 %v787, %v2125
    %v2230 = vadd.f32 %v788, %v2128
    %v2231 = vadd.f32 %v789, %v2133
    %v2232 = vadd.f32 %v790, %v2136
    %v2233 = vadd.f32 %v791, %v2141
    %v2234 = vadd.f32 %v792, %v2144
    %v2235 = vadd.f32 %v793, %v2149
    %v2236 = vadd.f32 %v794, %v2152
    %v2237 = vadd.f32 %v795, %v2157
    %v2238 = vadd.f32 %v796, %v2160
    %v2239 = vadd.f32 %v797, %v2165
    %v2240 = vadd.f32 %v798, %v2168
    %v2241 = vadd.f32 %v799, %v2173
    %v2242 = vadd.f32 %v800, %v2176
    %2243 = vst [vmem:[#allocation2] sm:$0xff] %v2179
    %2244 = vst [vmem:[#allocation2 + $0x8] sm:$0xff] %v2180
    %2245 = vst [vmem:[#allocation2 + $0x10] sm:$0xff] %v2181
    %2246 = vst [vmem:[#allocation2 + $0x18] sm:$0xff] %v2182
    %2247 = vst [vmem:[#allocation2 + $0x20] sm:$0xff] %v2183
    %2248 = vst [vmem:[#allocation2 + $0x28] sm:$0xff] %v2184
    %2249 = vst [vmem:[#allocation2 + $0x30] sm:$0xff] %v2185
    %2250 = vst [vmem:[#allocation2 + $0x38] sm:$0xff] %v2186
    %2251 = vst [vmem:[#allocation2 + $0x40] sm:$0xff] %v2187
    %2252 = vst [vmem:[#allocation2 + $0x48] sm:$0xff] %v2188
    %2253 = vst [vmem:[#allocation2 + $0x50] sm:$0xff] %v2189
    %2254 = vst [vmem:[#allocation2 + $0x58] sm:$0xff] %v2190
    %2255 = vst [vmem:[#allocation2 + $0x60] sm:$0xff] %v2191
    %2256 = vst [vmem:[#allocation2 + $0x68] sm:$0xff] %v2192
    %2257 = vst [vmem:[#allocation2 + $0x70] sm:$0xff] %v2193
    %2258 = vst [vmem:[#allocation2 + $0x78] sm:$0xff] %v2194
    %2259 = vst [vmem:[#allocation2 + $0x80] sm:$0xff] %v2195
    %2260 = vst [vmem:[#allocation2 + $0x88] sm:$0xff] %v2196
    %2261 = vst [vmem:[#allocation2 + $0x90] sm:$0xff] %v2197
    %2262 = vst [vmem:[#allocation2 + $0x98] sm:$0xff] %v2198
    %2263 = vst [vmem:[#allocation2 + $0xa0] sm:$0xff] %v2199
    %2264 = vst [vmem:[#allocation2 + $0xa8] sm:$0xff] %v2200
    %2265 = vst [vmem:[#allocation2 + $0xb0] sm:$0xff] %v2201
    %2266 = vst [vmem:[#allocation2 + $0xb8] sm:$0xff] %v2202
    %2267 = vst [vmem:[#allocation2 + $0xc0] sm:$0xff] %v2203
    %2268 = vst [vmem:[#allocation2 + $0xc8] sm:$0xff] %v2204
    %2269 = vst [vmem:[#allocation2 + $0xd0] sm:$0xff] %v2205
    %2270 = vst [vmem:[#allocation2 + $0xd8] sm:$0xff] %v2206
    %2271 = vst [vmem:[#allocation2 + $0xe0] sm:$0xff] %v2207
    %2272 = vst [vmem:[#allocation2 + $0xe8] sm:$0xff] %v2208
    %2273 = vst [vmem:[#allocation2 + $0xf0] sm:$0xff] %v2209
    %2274 = vst [vmem:[#allocation2 + $0xf8] sm:$0xff] %v2210
    %2275 = vst [vmem:[#allocation2 + $0x100] sm:$0xff] %v2211
    %2276 = vst [vmem:[#allocation2 + $0x108] sm:$0xff] %v2212
    %2277 = vst [vmem:[#allocation2 + $0x110] sm:$0xff] %v2213
    %2278 = vst [vmem:[#allocation2 + $0x118] sm:$0xff] %v2214
    %2279 = vst [vmem:[#allocation2 + $0x120] sm:$0xff] %v2215
    %2280 = vst [vmem:[#allocation2 + $0x128] sm:$0xff] %v2216
    %2281 = vst [vmem:[#allocation2 + $0x130] sm:$0xff] %v2217
    %2282 = vst [vmem:[#allocation2 + $0x138] sm:$0xff] %v2218
    %2283 = vst [vmem:[#allocation2 + $0x140] sm:$0xff] %v2219
    %2284 = vst [vmem:[#allocation2 + $0x148] sm:$0xff] %v2220
    %2285 = vst [vmem:[#allocation2 + $0x150] sm:$0xff] %v2221
    %2286 = vst [vmem:[#allocation2 + $0x158] sm:$0xff] %v2222
    %2287 = vst [vmem:[#allocation2 + $0x160] sm:$0xff] %v2223
    %2288 = vst [vmem:[#allocation2 + $0x168] sm:$0xff] %v2224
    %2289 = vst [vmem:[#allocation2 + $0x170] sm:$0xff] %v2225
    %2290 = vst [vmem:[#allocation2 + $0x178] sm:$0xff] %v2226
    %2291 = vst [vmem:[#allocation2 + $0x180] sm:$0xff] %v2227
    %2292 = vst [vmem:[#allocation2 + $0x188] sm:$0xff] %v2228
    %2293 = vst [vmem:[#allocation2 + $0x190] sm:$0xff] %v2229
    %2294 = vst [vmem:[#allocation2 + $0x198] sm:$0xff] %v2230
    %2295 = vst [vmem:[#allocation2 + $0x1a0] sm:$0xff] %v2231
    %2296 = vst [vmem:[#allocation2 + $0x1a8] sm:$0xff] %v2232
    %2297 = vst [vmem:[#allocation2 + $0x1b0] sm:$0xff] %v2233
    %2298 = vst [vmem:[#allocation2 + $0x1b8] sm:$0xff] %v2234
    %2299 = vst [vmem:[#allocation2 + $0x1c0] sm:$0xff] %v2235
    %2300 = vst [vmem:[#allocation2 + $0x1c8] sm:$0xff] %v2236
    %2301 = vst [vmem:[#allocation2 + $0x1d0] sm:$0xff] %v2237
    %2302 = vst [vmem:[#allocation2 + $0x1d8] sm:$0xff] %v2238
    %2303 = vst [vmem:[#allocation2 + $0x1e0] sm:$0xff] %v2239
    %2304 = vst [vmem:[#allocation2 + $0x1e8] sm:$0xff] %v2240
    %2305 = vst [vmem:[#allocation2 + $0x1f0] sm:$0xff] %v2241
    %2306 = vst [vmem:[#allocation2 + $0x1f8] sm:$0xff] %v2242
    // Predicated region
    $region34: #{tpu_custom_call.1} parent=1 // pred_check
      %p2307 = pneg %p60
    $region35: #{tpu_custom_call.1} parent=1 // pred_check_branch
      %2309 = sbr.rel (%p2307) target = $region37
    $region36: #{tpu_custom_call.1} parent=1 // pred_region
      %v2310 = vld [vmem:[#allocation2] sm:$0xff]
      %v2311 = vld [vmem:[#allocation2 + $0x8] sm:$0xff]
      %v2312 = vld [vmem:[#allocation2 + $0x10] sm:$0xff]
      %v2313 = vld [vmem:[#allocation2 + $0x18] sm:$0xff]
      %v2314 = vld [vmem:[#allocation2 + $0x20] sm:$0xff]
      %v2315 = vld [vmem:[#allocation2 + $0x28] sm:$0xff]
      %v2316 = vld [vmem:[#allocation2 + $0x30] sm:$0xff]
      %v2317 = vld [vmem:[#allocation2 + $0x38] sm:$0xff]
      %v2318 = vld [vmem:[#allocation2 + $0x40] sm:$0xff]
      %v2319 = vld [vmem:[#allocation2 + $0x48] sm:$0xff]
      %v2320 = vld [vmem:[#allocation2 + $0x50] sm:$0xff]
      %v2321 = vld [vmem:[#allocation2 + $0x58] sm:$0xff]
      %v2322 = vld [vmem:[#allocation2 + $0x60] sm:$0xff]
      %v2323 = vld [vmem:[#allocation2 + $0x68] sm:$0xff]
      %v2324 = vld [vmem:[#allocation2 + $0x70] sm:$0xff]
      %v2325 = vld [vmem:[#allocation2 + $0x78] sm:$0xff]
      %v2326 = vld [vmem:[#allocation2 + $0x80] sm:$0xff]
      %v2327 = vld [vmem:[#allocation2 + $0x88] sm:$0xff]
      %v2328 = vld [vmem:[#allocation2 + $0x90] sm:$0xff]
      %v2329 = vld [vmem:[#allocation2 + $0x98] sm:$0xff]
      %v2330 = vld [vmem:[#allocation2 + $0xa0] sm:$0xff]
      %v2331 = vld [vmem:[#allocation2 + $0xa8] sm:$0xff]
      %v2332 = vld [vmem:[#allocation2 + $0xb0] sm:$0xff]
      %v2333 = vld [vmem:[#allocation2 + $0xb8] sm:$0xff]
      %v2334 = vld [vmem:[#allocation2 + $0xc0] sm:$0xff]
      %v2335 = vld [vmem:[#allocation2 + $0xc8] sm:$0xff]
      %v2336 = vld [vmem:[#allocation2 + $0xd0] sm:$0xff]
      %v2337 = vld [vmem:[#allocation2 + $0xd8] sm:$0xff]
      %v2338 = vld [vmem:[#allocation2 + $0xe0] sm:$0xff]
      %v2339 = vld [vmem:[#allocation2 + $0xe8] sm:$0xff]
      %v2340 = vld [vmem:[#allocation2 + $0xf0] sm:$0xff]
      %v2341 = vld [vmem:[#allocation2 + $0xf8] sm:$0xff]
      %v2342 = vld [vmem:[#allocation2 + $0x100] sm:$0xff]
      %v2343 = vld [vmem:[#allocation2 + $0x108] sm:$0xff]
      %v2344 = vld [vmem:[#allocation2 + $0x110] sm:$0xff]
      %v2345 = vld [vmem:[#allocation2 + $0x118] sm:$0xff]
      %v2346 = vld [vmem:[#allocation2 + $0x120] sm:$0xff]
      %v2347 = vld [vmem:[#allocation2 + $0x128] sm:$0xff]
      %v2348 = vld [vmem:[#allocation2 + $0x130] sm:$0xff]
      %v2349 = vld [vmem:[#allocation2 + $0x138] sm:$0xff]
      %v2350 = vld [vmem:[#allocation2 + $0x140] sm:$0xff]
      %v2351 = vld [vmem:[#allocation2 + $0x148] sm:$0xff]
      %v2352 = vld [vmem:[#allocation2 + $0x150] sm:$0xff]
      %v2353 = vld [vmem:[#allocation2 + $0x158] sm:$0xff]
      %v2354 = vld [vmem:[#allocation2 + $0x160] sm:$0xff]
      %v2355 = vld [vmem:[#allocation2 + $0x168] sm:$0xff]
      %v2356 = vld [vmem:[#allocation2 + $0x170] sm:$0xff]
      %v2357 = vld [vmem:[#allocation2 + $0x178] sm:$0xff]
      %v2358 = vld [vmem:[#allocation2 + $0x180] sm:$0xff]
      %v2359 = vld [vmem:[#allocation2 + $0x188] sm:$0xff]
      %v2360 = vld [vmem:[#allocation2 + $0x190] sm:$0xff]
      %v2361 = vld [vmem:[#allocation2 + $0x198] sm:$0xff]
      %v2362 = vld [vmem:[#allocation2 + $0x1a0] sm:$0xff]
      %v2363 = vld [vmem:[#allocation2 + $0x1a8] sm:$0xff]
      %v2364 = vld [vmem:[#allocation2 + $0x1b0] sm:$0xff]
      %v2365 = vld [vmem:[#allocation2 + $0x1b8] sm:$0xff]
      %v2366 = vld [vmem:[#allocation2 + $0x1c0] sm:$0xff]
      %v2367 = vld [vmem:[#allocation2 + $0x1c8] sm:$0xff]
      %v2368 = vld [vmem:[#allocation2 + $0x1d0] sm:$0xff]
      %v2369 = vld [vmem:[#allocation2 + $0x1d8] sm:$0xff]
      %v2370 = vld [vmem:[#allocation2 + $0x1e0] sm:$0xff]
      %v2371 = vld [vmem:[#allocation2 + $0x1e8] sm:$0xff]
      %v2372 = vld [vmem:[#allocation2 + $0x1f0] sm:$0xff]
      %v2373 = vld [vmem:[#allocation2 + $0x1f8] sm:$0xff]
      %v2374 = vld [vmem:[%s3] sm:$0x1]
      %v2376 = vlaneseq
      %v2377 = vshrl.u32 %v2376, 7
      %v2378 = vsub.s32 0, %v2377
      %v2379 = vrot.slane %v2374, %v2378
      %v2381 = vadd.f32 %v2310, %v2379
      %v2382 = vadd.f32 %v2311, %v2379
      %v2383 = vadd.f32 %v2312, %v2379
      %v2384 = vadd.f32 %v2313, %v2379
      %v2385 = vadd.f32 %v2314, %v2379
      %v2386 = vadd.f32 %v2315, %v2379
      %v2387 = vadd.f32 %v2316, %v2379
      %v2388 = vadd.f32 %v2317, %v2379
      %v2389 = vadd.f32 %v2318, %v2379
      %v2390 = vadd.f32 %v2319, %v2379
      %v2391 = vadd.f32 %v2320, %v2379
      %v2392 = vadd.f32 %v2321, %v2379
      %v2393 = vadd.f32 %v2322, %v2379
      %v2394 = vadd.f32 %v2323, %v2379
      %v2395 = vadd.f32 %v2324, %v2379
      %v2396 = vadd.f32 %v2325, %v2379
      %v2397 = vadd.f32 %v2326, %v2379
      %v2398 = vadd.f32 %v2327, %v2379
      %v2399 = vadd.f32 %v2328, %v2379
      %v2400 = vadd.f32 %v2329, %v2379
      %v2401 = vadd.f32 %v2330, %v2379
      %v2402 = vadd.f32 %v2331, %v2379
      %v2403 = vadd.f32 %v2332, %v2379
      %v2404 = vadd.f32 %v2333, %v2379
      %v2405 = vadd.f32 %v2334, %v2379
      %v2406 = vadd.f32 %v2335, %v2379
      %v2407 = vadd.f32 %v2336, %v2379
      %v2408 = vadd.f32 %v2337, %v2379
      %v2409 = vadd.f32 %v2338, %v2379
      %v2410 = vadd.f32 %v2339, %v2379
      %v2411 = vadd.f32 %v2340, %v2379
      %v2412 = vadd.f32 %v2341, %v2379
      %v2413 = vadd.f32 %v2342, %v2379
      %v2414 = vadd.f32 %v2343, %v2379
      %v2415 = vadd.f32 %v2344, %v2379
      %v2416 = vadd.f32 %v2345, %v2379
      %v2417 = vadd.f32 %v2346, %v2379
      %v2418 = vadd.f32 %v2347, %v2379
      %v2419 = vadd.f32 %v2348, %v2379
      %v2420 = vadd.f32 %v2349, %v2379
      %v2421 = vadd.f32 %v2350, %v2379
      %v2422 = vadd.f32 %v2351, %v2379
      %v2423 = vadd.f32 %v2352, %v2379
      %v2424 = vadd.f32 %v2353, %v2379
      %v2425 = vadd.f32 %v2354, %v2379
      %v2426 = vadd.f32 %v2355, %v2379
      %v2427 = vadd.f32 %v2356, %v2379
      %v2428 = vadd.f32 %v2357, %v2379
      %v2429 = vadd.f32 %v2358, %v2379
      %v2430 = vadd.f32 %v2359, %v2379
      %v2431 = vadd.f32 %v2360, %v2379
      %v2432 = vadd.f32 %v2361, %v2379
      %v2433 = vadd.f32 %v2362, %v2379
      %v2434 = vadd.f32 %v2363, %v2379
      %v2435 = vadd.f32 %v2364, %v2379
      %v2436 = vadd.f32 %v2365, %v2379
      %v2437 = vadd.f32 %v2366, %v2379
      %v2438 = vadd.f32 %v2367, %v2379
      %v2439 = vadd.f32 %v2368, %v2379
      %v2440 = vadd.f32 %v2369, %v2379
      %v2441 = vadd.f32 %v2370, %v2379
      %v2442 = vadd.f32 %v2371, %v2379
      %v2443 = vadd.f32 %v2372, %v2379
      %v2444 = vadd.f32 %v2373, %v2379
      %v2445 = vmax.f32 %v2381, 0.0
      %v2446 = vmax.f32 %v2382, 0.0
      %v2447 = vmax.f32 %v2383, 0.0
      %v2448 = vmax.f32 %v2384, 0.0
      %v2449 = vmax.f32 %v2385, 0.0
      %v2450 = vmax.f32 %v2386, 0.0
      %v2451 = vmax.f32 %v2387, 0.0
      %v2452 = vmax.f32 %v2388, 0.0
      %v2453 = vmax.f32 %v2389, 0.0
      %v2454 = vmax.f32 %v2390, 0.0
      %v2455 = vmax.f32 %v2391, 0.0
      %v2456 = vmax.f32 %v2392, 0.0
      %v2457 = vmax.f32 %v2393, 0.0
      %v2458 = vmax.f32 %v2394, 0.0
      %v2459 = vmax.f32 %v2395, 0.0
      %v2460 = vmax.f32 %v2396, 0.0
      %v2461 = vmax.f32 %v2397, 0.0
      %v2462 = vmax.f32 %v2398, 0.0
      %v2463 = vmax.f32 %v2399, 0.0
      %v2464 = vmax.f32 %v2400, 0.0
      %v2465 = vmax.f32 %v2401, 0.0
      %v2466 = vmax.f32 %v2402, 0.0
      %v2467 = vmax.f32 %v2403, 0.0
      %v2468 = vmax.f32 %v2404, 0.0
      %v2469 = vmax.f32 %v2405, 0.0
      %v2470 = vmax.f32 %v2406, 0.0
      %v2471 = vmax.f32 %v2407, 0.0
      %v2472 = vmax.f32 %v2408, 0.0
      %v2473 = vmax.f32 %v2409, 0.0
      %v2474 = vmax.f32 %v2410, 0.0
      %v2475 = vmax.f32 %v2411, 0.0
      %v2476 = vmax.f32 %v2412, 0.0
      %v2477 = vmax.f32 %v2413, 0.0
      %v2478 = vmax.f32 %v2414, 0.0
      %v2479 = vmax.f32 %v2415, 0.0
      %v2480 = vmax.f32 %v2416, 0.0
      %v2481 = vmax.f32 %v2417, 0.0
      %v2482 = vmax.f32 %v2418, 0.0
      %v2483 = vmax.f32 %v2419, 0.0
      %v2484 = vmax.f32 %v2420, 0.0
      %v2485 = vmax.f32 %v2421, 0.0
      %v2486 = vmax.f32 %v2422, 0.0
      %v2487 = vmax.f32 %v2423, 0.0
      %v2488 = vmax.f32 %v2424, 0.0
      %v2489 = vmax.f32 %v2425, 0.0
      %v2490 = vmax.f32 %v2426, 0.0
      %v2491 = vmax.f32 %v2427, 0.0
      %v2492 = vmax.f32 %v2428, 0.0
      %v2493 = vmax.f32 %v2429, 0.0
      %v2494 = vmax.f32 %v2430, 0.0
      %v2495 = vmax.f32 %v2431, 0.0
      %v2496 = vmax.f32 %v2432, 0.0
      %v2497 = vmax.f32 %v2433, 0.0
      %v2498 = vmax.f32 %v2434, 0.0
      %v2499 = vmax.f32 %v2435, 0.0
      %v2500 = vmax.f32 %v2436, 0.0
      %v2501 = vmax.f32 %v2437, 0.0
      %v2502 = vmax.f32 %v2438, 0.0
      %v2503 = vmax.f32 %v2439, 0.0
      %v2504 = vmax.f32 %v2440, 0.0
      %v2505 = vmax.f32 %v2441, 0.0
      %v2506 = vmax.f32 %v2442, 0.0
      %v2507 = vmax.f32 %v2443, 0.0
      %v2508 = vmax.f32 %v2444, 0.0
      %v2509 = vpack.c.bf16 %v2446, %v2445
      %v2510 = vpack.c.bf16 %v2448, %v2447
      %v2511 = vpack.c.bf16 %v2450, %v2449
      %v2512 = vpack.c.bf16 %v2452, %v2451
      %v2513 = vpack.c.bf16 %v2454, %v2453
      %v2514 = vpack.c.bf16 %v2456, %v2455
      %v2515 = vpack.c.bf16 %v2458, %v2457
      %v2516 = vpack.c.bf16 %v2460, %v2459
      %v2517 = vpack.c.bf16 %v2462, %v2461
      %v2518 = vpack.c.bf16 %v2464, %v2463
      %v2519 = vpack.c.bf16 %v2466, %v2465
      %v2520 = vpack.c.bf16 %v2468, %v2467
      %v2521 = vpack.c.bf16 %v2470, %v2469
      %v2522 = vpack.c.bf16 %v2472, %v2471
      %v2523 = vpack.c.bf16 %v2474, %v2473
      %v2524 = vpack.c.bf16 %v2476, %v2475
      %v2525 = vpack.c.bf16 %v2478, %v2477
      %v2526 = vpack.c.bf16 %v2480, %v2479
      %v2527 = vpack.c.bf16 %v2482, %v2481
      %v2528 = vpack.c.bf16 %v2484, %v2483
      %v2529 = vpack.c.bf16 %v2486, %v2485
      %v2530 = vpack.c.bf16 %v2488, %v2487
      %v2531 = vpack.c.bf16 %v2490, %v2489
      %v2532 = vpack.c.bf16 %v2492, %v2491
      %v2533 = vpack.c.bf16 %v2494, %v2493
      %v2534 = vpack.c.bf16 %v2496, %v2495
      %v2535 = vpack.c.bf16 %v2498, %v2497
      %v2536 = vpack.c.bf16 %v2500, %v2499
      %v2537 = vpack.c.bf16 %v2502, %v2501
      %v2538 = vpack.c.bf16 %v2504, %v2503
      %v2539 = vpack.c.bf16 %v2506, %v2505
      %v2540 = vpack.c.bf16 %v2508, %v2507
      %v2573 = vunpack.c.l.b16 %v2509
      %v2574 = vunpack.c.h.b16 %v2509
      %v2575 = vunpack.c.l.b16 %v2510
      %v2576 = vunpack.c.h.b16 %v2510
      %v2577 = vunpack.c.l.b16 %v2511
      %v2578 = vunpack.c.h.b16 %v2511
      %v2579 = vunpack.c.l.b16 %v2512
      %v2580 = vunpack.c.h.b16 %v2512
      %v2581 = vunpack.c.l.b16 %v2513
      %v2582 = vunpack.c.h.b16 %v2513
      %v2583 = vunpack.c.l.b16 %v2514
      %v2584 = vunpack.c.h.b16 %v2514
      %v2585 = vunpack.c.l.b16 %v2515
      %v2586 = vunpack.c.h.b16 %v2515
      %v2587 = vunpack.c.l.b16 %v2516
      %v2588 = vunpack.c.h.b16 %v2516
      %v2589 = vunpack.c.l.b16 %v2517
      %v2590 = vunpack.c.h.b16 %v2517
      %v2591 = vunpack.c.l.b16 %v2518
      %v2592 = vunpack.c.h.b16 %v2518
      %v2593 = vunpack.c.l.b16 %v2519
      %v2594 = vunpack.c.h.b16 %v2519
      %v2595 = vunpack.c.l.b16 %v2520
      %v2596 = vunpack.c.h.b16 %v2520
      %v2597 = vunpack.c.l.b16 %v2521
      %v2598 = vunpack.c.h.b16 %v2521
      %v2599 = vunpack.c.l.b16 %v2522
      %v2600 = vunpack.c.h.b16 %v2522
      %v2601 = vunpack.c.l.b16 %v2523
      %v2602 = vunpack.c.h.b16 %v2523
      %v2603 = vunpack.c.l.b16 %v2524
      %v2604 = vunpack.c.h.b16 %v2524
      %v2605 = vunpack.c.l.b16 %v2525
      %v2606 = vunpack.c.h.b16 %v2525
      %v2607 = vunpack.c.l.b16 %v2526
      %v2608 = vunpack.c.h.b16 %v2526
      %v2609 = vunpack.c.l.b16 %v2527
      %v2610 = vunpack.c.h.b16 %v2527
      %v2611 = vunpack.c.l.b16 %v2528
      %v2612 = vunpack.c.h.b16 %v2528
      %v2613 = vunpack.c.l.b16 %v2529
      %v2614 = vunpack.c.h.b16 %v2529
      %v2615 = vunpack.c.l.b16 %v2530
      %v2616 = vunpack.c.h.b16 %v2530
      %v2617 = vunpack.c.l.b16 %v2531
      %v2618 = vunpack.c.h.b16 %v2531
      %v2619 = vunpack.c.l.b16 %v2532
      %v2620 = vunpack.c.h.b16 %v2532
      %v2621 = vunpack.c.l.b16 %v2533
      %v2622 = vunpack.c.h.b16 %v2533
      %v2623 = vunpack.c.l.b16 %v2534
      %v2624 = vunpack.c.h.b16 %v2534
      %v2625 = vunpack.c.l.b16 %v2535
      %v2626 = vunpack.c.h.b16 %v2535
      %v2627 = vunpack.c.l.b16 %v2536
      %v2628 = vunpack.c.h.b16 %v2536
      %v2629 = vunpack.c.l.b16 %v2537
      %v2630 = vunpack.c.h.b16 %v2537
      %v2631 = vunpack.c.l.b16 %v2538
      %v2632 = vunpack.c.h.b16 %v2538
      %v2633 = vunpack.c.l.b16 %v2539
      %v2634 = vunpack.c.h.b16 %v2539
      %v2635 = vunpack.c.l.b16 %v2540
      %v2636 = vunpack.c.h.b16 %v2540
      %v2637 = vpack.c.b16 %v2573, %v2573
      %v2638 = vpack.c.b16 %v2574, %v2574
      %v2639 = vpack.c.b16 %v2575, %v2575
      %v2640 = vpack.c.b16 %v2576, %v2576
      %v2641 = vpack.c.b16 %v2577, %v2577
      %v2642 = vpack.c.b16 %v2578, %v2578
      %v2643 = vpack.c.b16 %v2579, %v2579
      %v2644 = vpack.c.b16 %v2580, %v2580
      %v2645 = vpack.c.b16 %v2581, %v2581
      %v2646 = vpack.c.b16 %v2582, %v2582
      %v2647 = vpack.c.b16 %v2583, %v2583
      %v2648 = vpack.c.b16 %v2584, %v2584
      %v2649 = vpack.c.b16 %v2585, %v2585
      %v2650 = vpack.c.b16 %v2586, %v2586
      %v2651 = vpack.c.b16 %v2587, %v2587
      %v2652 = vpack.c.b16 %v2588, %v2588
      %v2653 = vpack.c.b16 %v2589, %v2589
      %v2654 = vpack.c.b16 %v2590, %v2590
      %v2655 = vpack.c.b16 %v2591, %v2591
      %v2656 = vpack.c.b16 %v2592, %v2592
      %v2657 = vpack.c.b16 %v2593, %v2593
      %v2658 = vpack.c.b16 %v2594, %v2594
      %v2659 = vpack.c.b16 %v2595, %v2595
      %v2660 = vpack.c.b16 %v2596, %v2596
      %v2661 = vpack.c.b16 %v2597, %v2597
      %v2662 = vpack.c.b16 %v2598, %v2598
      %v2663 = vpack.c.b16 %v2599, %v2599
      %v2664 = vpack.c.b16 %v2600, %v2600
      %v2665 = vpack.c.b16 %v2601, %v2601
      %v2666 = vpack.c.b16 %v2602, %v2602
      %v2667 = vpack.c.b16 %v2603, %v2603
      %v2668 = vpack.c.b16 %v2604, %v2604
      %v2669 = vpack.c.b16 %v2605, %v2605
      %v2670 = vpack.c.b16 %v2606, %v2606
      %v2671 = vpack.c.b16 %v2607, %v2607
      %v2672 = vpack.c.b16 %v2608, %v2608
      %v2673 = vpack.c.b16 %v2609, %v2609
      %v2674 = vpack.c.b16 %v2610, %v2610
      %v2675 = vpack.c.b16 %v2611, %v2611
      %v2676 = vpack.c.b16 %v2612, %v2612
      %v2677 = vpack.c.b16 %v2613, %v2613
      %v2678 = vpack.c.b16 %v2614, %v2614
      %v2679 = vpack.c.b16 %v2615, %v2615
      %v2680 = vpack.c.b16 %v2616, %v2616
      %v2681 = vpack.c.b16 %v2617, %v2617
      %v2682 = vpack.c.b16 %v2618, %v2618
      %v2683 = vpack.c.b16 %v2619, %v2619
      %v2684 = vpack.c.b16 %v2620, %v2620
      %v2685 = vpack.c.b16 %v2621, %v2621
      %v2686 = vpack.c.b16 %v2622, %v2622
      %v2687 = vpack.c.b16 %v2623, %v2623
      %v2688 = vpack.c.b16 %v2624, %v2624
      %v2689 = vpack.c.b16 %v2625, %v2625
      %v2690 = vpack.c.b16 %v2626, %v2626
      %v2691 = vpack.c.b16 %v2627, %v2627
      %v2692 = vpack.c.b16 %v2628, %v2628
      %v2693 = vpack.c.b16 %v2629, %v2629
      %v2694 = vpack.c.b16 %v2630, %v2630
      %v2695 = vpack.c.b16 %v2631, %v2631
      %v2696 = vpack.c.b16 %v2632, %v2632
      %v2697 = vpack.c.b16 %v2633, %v2633
      %v2698 = vpack.c.b16 %v2634, %v2634
      %v2699 = vpack.c.b16 %v2635, %v2635
      %v2700 = vpack.c.b16 %v2636, %v2636
      %2765 = vst [vmem:[#allocation9] sm:$0xf] %v2637
      %2766 = vst [vmem:[#allocation9 + $0x4] sm:$0xf] %v2638
      %2767 = vst [vmem:[#allocation9 + $0x8] sm:$0xf] %v2639
      %2768 = vst [vmem:[#allocation9 + $0xc] sm:$0xf] %v2640
      %2769 = vst [vmem:[#allocation9 + $0x10] sm:$0xf] %v2641
      %2770 = vst [vmem:[#allocation9 + $0x14] sm:$0xf] %v2642
      %2771 = vst [vmem:[#allocation9 + $0x18] sm:$0xf] %v2643
      %2772 = vst [vmem:[#allocation9 + $0x1c] sm:$0xf] %v2644
      %2773 = vst [vmem:[#allocation9 + $0x20] sm:$0xf] %v2645
      %2774 = vst [vmem:[#allocation9 + $0x24] sm:$0xf] %v2646
      %2775 = vst [vmem:[#allocation9 + $0x28] sm:$0xf] %v2647
      %2776 = vst [vmem:[#allocation9 + $0x2c] sm:$0xf] %v2648
      %2777 = vst [vmem:[#allocation9 + $0x30] sm:$0xf] %v2649
      %2778 = vst [vmem:[#allocation9 + $0x34] sm:$0xf] %v2650
      %2779 = vst [vmem:[#allocation9 + $0x38] sm:$0xf] %v2651
      %2780 = vst [vmem:[#allocation9 + $0x3c] sm:$0xf] %v2652
      %2781 = vst [vmem:[#allocation9 + $0x40] sm:$0xf] %v2653
      %2782 = vst [vmem:[#allocation9 + $0x44] sm:$0xf] %v2654
      %2783 = vst [vmem:[#allocation9 + $0x48] sm:$0xf] %v2655
      %2784 = vst [vmem:[#allocation9 + $0x4c] sm:$0xf] %v2656
      %2785 = vst [vmem:[#allocation9 + $0x50] sm:$0xf] %v2657
      %2786 = vst [vmem:[#allocation9 + $0x54] sm:$0xf] %v2658
      %2787 = vst [vmem:[#allocation9 + $0x58] sm:$0xf] %v2659
      %2788 = vst [vmem:[#allocation9 + $0x5c] sm:$0xf] %v2660
      %2789 = vst [vmem:[#allocation9 + $0x60] sm:$0xf] %v2661
      %2790 = vst [vmem:[#allocation9 + $0x64] sm:$0xf] %v2662
      %2791 = vst [vmem:[#allocation9 + $0x68] sm:$0xf] %v2663
      %2792 = vst [vmem:[#allocation9 + $0x6c] sm:$0xf] %v2664
      %2793 = vst [vmem:[#allocation9 + $0x70] sm:$0xf] %v2665
      %2794 = vst [vmem:[#allocation9 + $0x74] sm:$0xf] %v2666
      %2795 = vst [vmem:[#allocation9 + $0x78] sm:$0xf] %v2667
      %2796 = vst [vmem:[#allocation9 + $0x7c] sm:$0xf] %v2668
      %2797 = vst [vmem:[#allocation9 + $0x80] sm:$0xf] %v2669
      %2798 = vst [vmem:[#allocation9 + $0x84] sm:$0xf] %v2670
      %2799 = vst [vmem:[#allocation9 + $0x88] sm:$0xf] %v2671
      %2800 = vst [vmem:[#allocation9 + $0x8c] sm:$0xf] %v2672
      %2801 = vst [vmem:[#allocation9 + $0x90] sm:$0xf] %v2673
      %2802 = vst [vmem:[#allocation9 + $0x94] sm:$0xf] %v2674
      %2803 = vst [vmem:[#allocation9 + $0x98] sm:$0xf] %v2675
      %2804 = vst [vmem:[#allocation9 + $0x9c] sm:$0xf] %v2676
      %2805 = vst [vmem:[#allocation9 + $0xa0] sm:$0xf] %v2677
      %2806 = vst [vmem:[#allocation9 + $0xa4] sm:$0xf] %v2678
      %2807 = vst [vmem:[#allocation9 + $0xa8] sm:$0xf] %v2679
      %2808 = vst [vmem:[#allocation9 + $0xac] sm:$0xf] %v2680
      %2809 = vst [vmem:[#allocation9 + $0xb0] sm:$0xf] %v2681
      %2810 = vst [vmem:[#allocation9 + $0xb4] sm:$0xf] %v2682
      %2811 = vst [vmem:[#allocation9 + $0xb8] sm:$0xf] %v2683
      %2812 = vst [vmem:[#allocation9 + $0xbc] sm:$0xf] %v2684
      %2813 = vst [vmem:[#allocation9 + $0xc0] sm:$0xf] %v2685
      %2814 = vst [vmem:[#allocation9 + $0xc4] sm:$0xf] %v2686
      %2815 = vst [vmem:[#allocation9 + $0xc8] sm:$0xf] %v2687
      %2816 = vst [vmem:[#allocation9 + $0xcc] sm:$0xf] %v2688
      %2817 = vst [vmem:[#allocation9 + $0xd0] sm:$0xf] %v2689
      %2818 = vst [vmem:[#allocation9 + $0xd4] sm:$0xf] %v2690
      %2819 = vst [vmem:[#allocation9 + $0xd8] sm:$0xf] %v2691
      %2820 = vst [vmem:[#allocation9 + $0xdc] sm:$0xf] %v2692
      %2821 = vst [vmem:[#allocation9 + $0xe0] sm:$0xf] %v2693
      %2822 = vst [vmem:[#allocation9 + $0xe4] sm:$0xf] %v2694
      %2823 = vst [vmem:[#allocation9 + $0xe8] sm:$0xf] %v2695
      %2824 = vst [vmem:[#allocation9 + $0xec] sm:$0xf] %v2696
      %2825 = vst [vmem:[#allocation9 + $0xf0] sm:$0xf] %v2697
      %2826 = vst [vmem:[#allocation9 + $0xf4] sm:$0xf] %v2698
      %2827 = vst [vmem:[#allocation9 + $0xf8] sm:$0xf] %v2699
      %2828 = vst [vmem:[#allocation9 + $0xfc] sm:$0xf] %v2700
    $region37: #{tpu_custom_call.1} parent=1 // pred_fallthru
      _
    // Predicated region
    $region38: #{tpu_custom_call.1} parent=1 // pred_check
      _
    $region39: #{tpu_custom_call.1} parent=1 // pred_check_branch
      %2830 = sbr.rel (0) target = $region41
    $region40: #{tpu_custom_call.1} parent=1 // pred_region
      %s2832 = ssub.s32 4096, 4096
      %2833 = vsyncadd [#allocation5], %s2832
      %s2834 = sshll.u32 [#allocation9], 4
      %s2835 = int_to_ptr.vmem [resolvable:$true] %s2834
      %2840 = dma.vmem_to_hbm [thread:$0]  %s2835, 4096, %s4, [#allocation5], 64, 64, 4
    $region41: #{tpu_custom_call.1} parent=1 // pred_fallthru
      _
    // Predicated region
    $region42: #{tpu_custom_call.1} parent=1 // pred_check
      _
    $region43: #{tpu_custom_call.1} parent=1 // pred_check_branch
      %2842 = sbr.rel (0) target = $region45
    $region44: #{tpu_custom_call.1} parent=1 // pred_region
      %2843 = dma.done [#allocation5], 4096
    $region45: #{tpu_custom_call.1} parent=1 // pred_fallthru
      _
    %2844 = vsyncpa [#allocation4], 1
    %2845 = vsyncpa [#allocation7], 1
    %2846 = vsyncpa [#allocation5], 1

</llo_original>
